<compile_context>
chip_gen: v7x
topology: tpu7x:2x2x1
jax: 0.10.0
libtpu: 0.0.40
codegen_flags: <defaults>
</compile_context>

<pallas_src>
import math

import jax
import jax.numpy as jnp
from jax.experimental import pallas as pl
from jax.experimental.pallas import tpu as pltpu

NEG_SLOPE = 0.2
BN_EPS = 1e-5


# ---------------------------------------------------------------------------
# small helpers
# ---------------------------------------------------------------------------
def _round_up(v, m):
    return (v + m - 1) // m * m


def _leaky_relu(x):
    return jnp.where(x >= 0, x, NEG_SLOPE * x)


def _fold_bn(gamma, beta, mean, var):
    scale = gamma / jnp.sqrt(var + BN_EPS)
    shift = beta - mean * scale
    return scale, shift


def _tap_weight(w, cout_pad, cin_pad, scale=None, dtype=jnp.bfloat16):
    """torch Conv1d weight (Cout, Cin, 3) -> (3, cout_pad, cin_pad) tap-major.

    Tap k multiplies the k-th shifted copy of the input (x[t-1], x[t], x[t+1]).
    Optional per-output-channel `scale` folds an inference-mode BatchNorm scale
    into the weights.  Channel dims are zero-padded to sublane multiples.
    """
    cout, cin, _ = w.shape
    if scale is not None:
        w = w * scale[:, None, None]
    w = jnp.transpose(w, (2, 0, 1))                       # (3, Cout, Cin)
    w = jnp.pad(w, ((0, 0), (0, cout_pad - cout), (0, cin_pad - cin)))
    return w.astype(dtype)


def _shift_col(t, cout_pad):
    """Per-channel BN shift as a (cout_pad, 1) f32 column (padded rows = 0)."""
    return jnp.pad(t, (0, cout_pad - t.shape[0]))[:, None].astype(jnp.float32)


# ---------------------------------------------------------------------------
# fused encoder kernel
# ---------------------------------------------------------------------------
def _make_encoder_kernel(n_layers, n_pad, compute_dtype):
    """All DownConv1D blocks fused into one kernel body (values stay in VMEM).

    Layout: activations are (C, N) with all samples flattened into the lane
    axis (lane = sample*l + position, N = n_pad a multiple of 128).  At layer
    `li` valid data sits at lanes spaced 2**li apart; tap shifts are rolls by
    +-2**li with per-sample boundary masks, so stride-2 convs need no
    compaction inside the kernel.
    """

    def kernel(*refs):
        x_ref, nf_ref = refs[0], refs[1]
        out_ref = refs[-1]
        nf = nf_ref[...]                               # (1, N) not-first-position mask
        h = x_ref[0].astype(jnp.float32)               # (C, N)
        idx = 2
        for li in range(n_layers):
            w1, b1, w2, w3, b3, wd, nl_ref = refs[idx:idx + 7]
            idx += 7
            nl = nl_ref[...]                           # (1, N) not-last-position mask
            step = 1 << li                             # lane distance between taps

            def taps(v, step=step, nf=nf, nl=nl):
                # [x[t-1], x[t], x[t+1]] as three (C, N) tiles; rolls run on the
                # XLU, boundary masks on the VPU (both off the MXU's slot).
                m = pltpu.roll(v, step, axis=1) * nf
                p = pltpu.roll(v, n_pad - step, axis=1) * nl
                return (m.astype(compute_dtype),
                        v.astype(compute_dtype),
                        p.astype(compute_dtype))

            def conv3(w_ref, t):
                # per-tap matmuls accumulated in f32 (no concatenates)
                acc = jnp.dot(w_ref[0], t[0], preferred_element_type=jnp.float32)
                acc = acc + jnp.dot(w_ref[1], t[1],
                                    preferred_element_type=jnp.float32)
                acc = acc + jnp.dot(w_ref[2], t[2],
                                    preferred_element_type=jnp.float32)
                return acc

            tx = taps(h)
            # Conv1d(cin->cout, 3, pad=1) + BatchNorm (scale folded) + LeakyReLU
            h1 = _leaky_relu(conv3(w1, tx) + b1[...])
            # Conv1d(cout->cout, 3, pad=1)
            h2 = conv3(w2, taps(h1))
            # Conv1d(cout->cout, 3, stride=2, pad=1) + BatchNorm: evaluated at
            # every lane; only lanes spaced 2*step apart are meaningful and
            # carried forward (dilated evaluation, no in-kernel subsample).
            h3 = conv3(w3, taps(h2)) + b3[...]
            # downsample Conv1d(cin->cout, 3, stride=2, pad=1) reuses x's taps
            h3 = h3 + conv3(wd, tx)
            h = _leaky_relu(h3)
        out_ref[0] = h.astype(out_ref.dtype)           # lane-dense (C, N) store

    return kernel


# ---------------------------------------------------------------------------
# ConvEncoder wrapper (parameter folding + layout plumbing stay in plain JAX)
# ---------------------------------------------------------------------------
def conv_encoder(x, layer_params, *, num_core_splits=1,
                 compute_dtype=jnp.bfloat16):
    """x: (b, c, n, l) f32  ->  (b, 1, n, c_out * l_out) f32."""
    b, c, n, l = x.shape
    BN = b * n
    n_layers = len(layer_params)
    assert l % (1 << n_layers) == 0, "l must be divisible by 2**n_layers"

    nsplit = max(num_core_splits, 1)
    if nsplit > 1 and (BN % nsplit != 0 or ((BN // nsplit) * l) % 128 != 0):
        nsplit = 1                                    # keep lanes 128-dense
    spb = BN // nsplit                                # samples per grid step
    n_valid = spb * l
    n_pad = _round_up(n_valid, 128)                   # roll/store lane alignment
    cin_pad0 = _round_up(c, 8)

    # 'b c n l -> c (b n) l' flat: lane = sample*l + pos, sample = b_i*n + n_i.
    xf = jnp.transpose(x, (1, 0, 2, 3)).reshape(c, nsplit, n_valid)
    xf = jnp.pad(xf, ((0, cin_pad0 - c), (0, 0), (0, n_pad - n_valid)))
    x3 = xf.transpose(1, 0, 2)                        # (nsplit, cin_pad0, n_pad)

    pos = jnp.arange(n_pad) % l                       # position within a sample
    nf = (pos != 0).astype(jnp.float32)[None, :]      # shared not-first mask

    def _replicated(a):
        nd = a.ndim
        return pl.BlockSpec(a.shape, lambda i, _nd=nd: (0,) * _nd)

    inputs = [x3, nf]
    in_specs = [pl.BlockSpec((1, cin_pad0, n_pad), lambda i: (i, 0, 0)),
                _replicated(nf)]

    flops = 0
    L = l                                             # per-sample length at layer input
    cin_p = cin_pad0
    for li, p in enumerate(layer_params):
        cout = p["w1"].shape[0]
        cout_p = _round_up(cout, 8)
        step = 1 << li
        s1, t1 = _fold_bn(p["bn1_gamma"], p["bn1_beta"], p["bn1_mean"], p["bn1_var"])
        s2, t2 = _fold_bn(p["bn2_gamma"], p["bn2_beta"], p["bn2_mean"], p["bn2_var"])
        # not-last mask for this layer's resolution (last valid position per sample)
        nl = (pos != step * (L - 1)).astype(jnp.float32)[None, :]
        layer_inputs = [
            _tap_weight(p["w1"], cout_p, cin_p, scale=s1, dtype=compute_dtype),
            _shift_col(t1, cout_p),                   # BN1 shift
            _tap_weight(p["w2"], cout_p, cout_p, dtype=compute_dtype),
            _tap_weight(p["w3"], cout_p, cout_p, scale=s2, dtype=compute_dtype),
            _shift_col(t2, cout_p),                   # BN2 shift
            _tap_weight(p["wd"], cout_p, cin_p, dtype=compute_dtype),
            nl,
        ]
        inputs += layer_inputs
        in_specs += [_replicated(a) for a in layer_inputs]
        flops += nsplit * 2 * 3 * n_pad * 2 * (cout_p * cin_p + cout_p * cout_p)
        cin_p = cout_p
        L //= 2

    cout_last = layer_params[-1]["w1"].shape[0]
    cout_last_p = _round_up(cout_last, 8)
    bytes_accessed = int(sum(a.size * a.dtype.itemsize for a in inputs)
                         + nsplit * cout_last_p * n_pad * 4)

    out3 = pl.pallas_call(
        _make_encoder_kernel(n_layers, n_pad, compute_dtype),
        out_shape=jax.ShapeDtypeStruct((nsplit, cout_last_p, n_pad), jnp.float32),
        grid=(nsplit,),
        in_specs=in_specs,
        out_specs=pl.BlockSpec((1, cout_last_p, n_pad), lambda i: (i, 0, 0)),
        compiler_params=pltpu.CompilerParams(
            dimension_semantics=("parallel",) if nsplit > 1 else ("arbitrary",)),
        cost_estimate=pl.CostEstimate(flops=int(flops), transcendentals=0,
                                      bytes_accessed=bytes_accessed),
    )(*inputs)

    # Tiny epilogue in plain JAX: strip padding, pick the dilated valid lanes,
    # and lay out '(b n) c l -> b 1 n (c l)'.
    stride_f = 1 << n_layers
    Lf = l // stride_f
    y = out3[:, :cout_last, :n_valid]                 # drop channel / lane padding
    y = y.reshape(nsplit, cout_last, spb, l)[..., ::stride_f]   # (ns, C, spb, Lf)
    y = y.transpose(0, 2, 1, 3).reshape(BN, cout_last, Lf)
    y = y.reshape(b, n, cout_last * Lf)
    return y[:, None, :, :]


# ---------------------------------------------------------------------------
# deterministic parameter initialization (synthetic, PyTorch layouts)
# ---------------------------------------------------------------------------
def init_downconv_params(key, cin, cout):
    k = jax.random.split(key, 6)

    def conv_w(kk, ci, co):
        # PyTorch kaiming-uniform style bound; Conv1d weight layout (Cout, Cin, 3)
        bound = 1.0 / math.sqrt(ci * 3.0)
        return jax.random.uniform(kk, (co, ci, 3), jnp.float32, -bound, bound)

    def bn_params(kk, ch):
        gamma = jax.random.uniform(kk, (ch,), jnp.float32, 0.5, 1.5)
        beta = jax.random.uniform(jax.random.fold_in(kk, 1), (ch,),
                                  jnp.float32, -0.5, 0.5)
        running_mean = jnp.zeros((ch,), jnp.float32)
        running_var = jnp.ones((ch,), jnp.float32)
        return gamma, beta, running_mean, running_var

    g1, b1, m1, v1 = bn_params(k[4], cout)
    g2, b2, m2, v2 = bn_params(k[5], cout)
    return dict(
        w1=conv_w(k[0], cin, cout),    # Conv1d(cin, cout, 3, pad=1, bias=False)
        w2=conv_w(k[1], cout, cout),   # Conv1d(cout, cout, 3, pad=1, bias=False)
        w3=conv_w(k[2], cout, cout),   # Conv1d(cout, cout, 3, s=2, pad=1, bias=False)
        wd=conv_w(k[3], cin, cout),    # downsample Conv1d(cin, cout, 3, s=2, pad=1)
        bn1_gamma=g1, bn1_beta=b1, bn1_mean=m1, bn1_var=v1,
        bn2_gamma=g2, bn2_beta=b2, bn2_mean=m2, bn2_var=v2,
    )


# ---------------------------------------------------------------------------
# pure-JAX reference (same inference-mode BN math) for a correctness gate
# ---------------------------------------------------------------------------
def _ref_conv1d(x, w, stride):
    """x: (BN, Cin, L), w: (Cout, Cin, 3), padding=1."""
    L = x.shape[-1]
    l_out = (L + 2 - 3) // stride + 1
    xp = jnp.pad(x, ((0, 0), (0, 0), (1, 1)))
    cols = jnp.stack(
        [xp[:, :, k:k + stride * (l_out - 1) + 1:stride] for k in range(3)],
        axis=-1)                                        # (BN, Cin, Lout, 3)
    return jnp.einsum("bclk,ock->bol", cols, w,
                      precision=jax.lax.Precision.HIGHEST)


def _ref_downconv(x, p):
    s1, t1 = _fold_bn(p["bn1_gamma"], p["bn1_beta"], p["bn1_mean"], p["bn1_var"])
    s2, t2 = _fold_bn(p["bn2_gamma"], p["bn2_beta"], p["bn2_mean"], p["bn2_var"])
    h = _ref_conv1d(x, p["w1"], 1) * s1[None, :, None] + t1[None, :, None]
    h = _leaky_relu(h)
    h = _ref_conv1d(h, p["w2"], 1)
    h = _ref_conv1d(h, p["w3"], 2) * s2[None, :, None] + t2[None, :, None]
    out = h + _ref_conv1d(x, p["wd"], 2)
    return _leaky_relu(out)


def _ref_conv_encoder(x, layer_params):
    b, c, n, l = x.shape
    h = jnp.transpose(x, (0, 2, 1, 3)).reshape(b * n, c, l)
    for p in layer_params:
        h = _ref_downconv(h, p)
    _, c2, l2 = h.shape
    return h.reshape(b, n, c2 * l2)[:, None, :, :]


if __name__ == "__main__":
    # config = {'encoder': {'dim': [8, 16], 'l': 16, 'n_channels': 4}}
    dim = [8, 16]
    l_in = 16
    n_channels = 4
    b, n = 2, 4

    key = jax.random.PRNGKey(0)
    kx, kp = jax.random.split(key)
    x = jax.random.normal(kx, (b, n_channels, n, l_in), jnp.float32)

    chans = [n_channels] + dim
    keys = jax.random.split(kp, len(dim))
    layer_params = [init_downconv_params(keys[i], chans[i], chans[i + 1])
                    for i in range(len(dim))]

    run_bf16 = jax.jit(lambda xx, pp: conv_encoder(xx, pp,
                                                   compute_dtype=jnp.bfloat16))
    run_f32 = jax.jit(lambda xx, pp: conv_encoder(xx, pp,
                                                  compute_dtype=jnp.float32))

    out = jax.block_until_ready(run_bf16(x, layer_params))
    out_f32 = jax.block_until_ready(run_f32(x, layer_params))

    dim_out = dim[-1] * l_in // (2 ** len(dim))          # 16 * 16 / 4 = 64
    assert out.shape == (b, 1, n, dim_out), out.shape
    assert bool(jnp.all(jnp.isfinite(out)))

    ref = _ref_conv_encoder(x, layer_params)
    # Tight gate on the all-f32 kernel: catches any indexing / masking bug.
    err_f32 = float(jnp.max(jnp.abs(out_f32 - ref)))
    assert err_f32 < 1e-3, f"f32 kernel max abs err vs reference: {err_f32}"
    # Looser gate on the bf16-MXU kernel: only dtype rounding remains.
    err_bf16 = float(jnp.max(jnp.abs(out - ref)))
    assert err_bf16 < 1e-1, f"bf16 kernel max abs err vs reference: {err_bf16}"
    print("KERNEL_OK")
</pallas_src>

<mosaic_0001>
module attributes {stable_mosaic.version = 11 : i64} {
  func.func @kernel(%arg0: i32, %arg1: memref<1x8x128xf32, #tpu.memory_space<vmem>>, %arg2: memref<1x128xf32, #tpu.memory_space<vmem>>, %arg3: memref<3x8x8xbf16, #tpu.memory_space<vmem>>, %arg4: memref<8x1xf32, #tpu.memory_space<vmem>>, %arg5: memref<3x8x8xbf16, #tpu.memory_space<vmem>>, %arg6: memref<3x8x8xbf16, #tpu.memory_space<vmem>>, %arg7: memref<8x1xf32, #tpu.memory_space<vmem>>, %arg8: memref<3x8x8xbf16, #tpu.memory_space<vmem>>, %arg9: memref<1x128xf32, #tpu.memory_space<vmem>>, %arg10: memref<3x16x8xbf16, #tpu.memory_space<vmem>>, %arg11: memref<16x1xf32, #tpu.memory_space<vmem>>, %arg12: memref<3x16x16xbf16, #tpu.memory_space<vmem>>, %arg13: memref<3x16x16xbf16, #tpu.memory_space<vmem>>, %arg14: memref<16x1xf32, #tpu.memory_space<vmem>>, %arg15: memref<3x16x8xbf16, #tpu.memory_space<vmem>>, %arg16: memref<1x128xf32, #tpu.memory_space<vmem>>, %arg17: memref<1x16x128xf32, #tpu.memory_space<vmem>>) attributes {dimension_semantics = [#tpu.dimension_semantics<arbitrary>], iteration_bounds = array<i64: 1>, scalar_prefetch = 0 : i64, scratch_operands = 0 : i64, tpu.core_type = #tpu.core_type<tc>, window_params = [{transform_indices = @transform_0, window_bounds = array<i64: 1, 8, 128>}, {pipeline_mode = #tpu.pipeline_mode<synchronous>, transform_indices = @transform_1, window_bounds = array<i64: 1, 128>}, {pipeline_mode = #tpu.pipeline_mode<synchronous>, transform_indices = @transform_2, window_bounds = array<i64: 3, 8, 8>}, {pipeline_mode = #tpu.pipeline_mode<synchronous>, transform_indices = @transform_3, window_bounds = array<i64: 8, 1>}, {pipeline_mode = #tpu.pipeline_mode<synchronous>, transform_indices = @transform_4, window_bounds = array<i64: 3, 8, 8>}, {pipeline_mode = #tpu.pipeline_mode<synchronous>, transform_indices = @transform_5, window_bounds = array<i64: 3, 8, 8>}, {pipeline_mode = #tpu.pipeline_mode<synchronous>, transform_indices = @transform_6, window_bounds = array<i64: 8, 1>}, {pipeline_mode = #tpu.pipeline_mode<synchronous>, transform_indices = @transform_7, window_bounds = array<i64: 3, 8, 8>}, {pipeline_mode = #tpu.pipeline_mode<synchronous>, transform_indices = @transform_8, window_bounds = array<i64: 1, 128>}, {pipeline_mode = #tpu.pipeline_mode<synchronous>, transform_indices = @transform_9, window_bounds = array<i64: 3, 16, 8>}, {pipeline_mode = #tpu.pipeline_mode<synchronous>, transform_indices = @transform_10, window_bounds = array<i64: 16, 1>}, {pipeline_mode = #tpu.pipeline_mode<synchronous>, transform_indices = @transform_11, window_bounds = array<i64: 3, 16, 16>}, {pipeline_mode = #tpu.pipeline_mode<synchronous>, transform_indices = @transform_12, window_bounds = array<i64: 3, 16, 16>}, {pipeline_mode = #tpu.pipeline_mode<synchronous>, transform_indices = @transform_13, window_bounds = array<i64: 16, 1>}, {pipeline_mode = #tpu.pipeline_mode<synchronous>, transform_indices = @transform_14, window_bounds = array<i64: 3, 16, 8>}, {pipeline_mode = #tpu.pipeline_mode<synchronous>, transform_indices = @transform_15, window_bounds = array<i64: 1, 128>}, {transform_indices = @transform_16, window_bounds = array<i64: 1, 16, 128>}]} {
    %c0 = arith.constant 0 : index
    %c0_0 = arith.constant 0 : index
    %0 = vector.load %arg2[%c0, %c0_0] : memref<1x128xf32, #tpu.memory_space<vmem>>, vector<1x128xf32>
    %c0_1 = arith.constant 0 : index
    %c0_2 = arith.constant 0 : index
    %c0_3 = arith.constant 0 : index
    %1 = vector.load %arg1[%c0_1, %c0_2, %c0_3] : memref<1x8x128xf32, #tpu.memory_space<vmem>>, vector<1x8x128xf32>
    %2 = vector.shape_cast %1 : vector<1x8x128xf32> to vector<8x128xf32>
    %c0_4 = arith.constant 0 : index
    %c0_5 = arith.constant 0 : index
    %3 = vector.load %arg9[%c0_4, %c0_5] : memref<1x128xf32, #tpu.memory_space<vmem>>, vector<1x128xf32>
    %c1_i32 = arith.constant 1 : i32
    %4 = tpu.dynamic_rotate %2 by %c1_i32 dim 1 : vector<8x128xf32>, i32 -> vector<8x128xf32>
    %5 = vector.broadcast %0 : vector<1x128xf32> to vector<8x128xf32>
    %6 = arith.mulf %4, %5 : vector<8x128xf32>
    %c127_i32 = arith.constant 127 : i32
    %7 = tpu.dynamic_rotate %2 by %c127_i32 dim 1 : vector<8x128xf32>, i32 -> vector<8x128xf32>
    %8 = vector.broadcast %3 : vector<1x128xf32> to vector<8x128xf32>
    %9 = arith.mulf %7, %8 : vector<8x128xf32>
    %10 = arith.truncf %6 : vector<8x128xf32> to vector<8x128xbf16>
    %11 = arith.truncf %2 : vector<8x128xf32> to vector<8x128xbf16>
    %12 = arith.truncf %9 : vector<8x128xf32> to vector<8x128xbf16>
    %c0_6 = arith.constant 0 : index
    %c0_7 = arith.constant 0 : index
    %c0_8 = arith.constant 0 : index
    %13 = vector.load %arg3[%c0_6, %c0_7, %c0_8] : memref<3x8x8xbf16, #tpu.memory_space<vmem>>, vector<1x8x8xbf16>
    %14 = vector.shape_cast %13 : vector<1x8x8xbf16> to vector<8x8xbf16>
    %cst = arith.constant dense<0.000000e+00> : vector<8x128xf32>
    %15 = tpu.matmul %14, %10, %cst {dimension_numbers = #tpu.dot_dimension_numbers<[1], [0], [0], [1], [0, 0, 1, 1], [], []>} : vector<8x8xbf16>, vector<8x128xbf16>, vector<8x128xf32> -> vector<8x128xf32>
    %c1 = arith.constant 1 : index
    %c0_9 = arith.constant 0 : index
    %c0_10 = arith.constant 0 : index
    %16 = vector.load %arg3[%c1, %c0_9, %c0_10] : memref<3x8x8xbf16, #tpu.memory_space<vmem>>, vector<1x8x8xbf16>
    %17 = vector.shape_cast %16 : vector<1x8x8xbf16> to vector<8x8xbf16>
    %cst_11 = arith.constant dense<0.000000e+00> : vector<8x128xf32>
    %18 = tpu.matmul %17, %11, %cst_11 {dimension_numbers = #tpu.dot_dimension_numbers<[1], [0], [0], [1], [0, 0, 1, 1], [], []>} : vector<8x8xbf16>, vector<8x128xbf16>, vector<8x128xf32> -> vector<8x128xf32>
    %19 = arith.addf %15, %18 : vector<8x128xf32>
    %c2 = arith.constant 2 : index
    %c0_12 = arith.constant 0 : index
    %c0_13 = arith.constant 0 : index
    %20 = vector.load %arg3[%c2, %c0_12, %c0_13] : memref<3x8x8xbf16, #tpu.memory_space<vmem>>, vector<1x8x8xbf16>
    %21 = vector.shape_cast %20 : vector<1x8x8xbf16> to vector<8x8xbf16>
    %cst_14 = arith.constant dense<0.000000e+00> : vector<8x128xf32>
    %22 = tpu.matmul %21, %12, %cst_14 {dimension_numbers = #tpu.dot_dimension_numbers<[1], [0], [0], [1], [0, 0, 1, 1], [], []>} : vector<8x8xbf16>, vector<8x128xbf16>, vector<8x128xf32> -> vector<8x128xf32>
    %23 = arith.addf %19, %22 : vector<8x128xf32>
    %c0_15 = arith.constant 0 : index
    %c0_16 = arith.constant 0 : index
    %24 = vector.load %arg4[%c0_15, %c0_16] : memref<8x1xf32, #tpu.memory_space<vmem>>, vector<8x1xf32>
    %25 = vector.broadcast %24 : vector<8x1xf32> to vector<8x128xf32>
    %26 = arith.addf %23, %25 : vector<8x128xf32>
    %cst_17 = arith.constant 0.000000e+00 : f32
    %27 = vector.broadcast %cst_17 : f32 to vector<8x128xf32>
    %28 = arith.cmpf oge, %26, %27 : vector<8x128xf32>
    %cst_18 = arith.constant 2.000000e-01 : f32
    %29 = vector.broadcast %cst_18 : f32 to vector<8x128xf32>
    %30 = arith.mulf %29, %26 : vector<8x128xf32>
    %31 = arith.select %28, %26, %30 : vector<8x128xi1>, vector<8x128xf32>
    %c1_i32_19 = arith.constant 1 : i32
    %32 = tpu.dynamic_rotate %31 by %c1_i32_19 dim 1 : vector<8x128xf32>, i32 -> vector<8x128xf32>
    %33 = vector.broadcast %0 : vector<1x128xf32> to vector<8x128xf32>
    %34 = arith.mulf %32, %33 : vector<8x128xf32>
    %c127_i32_20 = arith.constant 127 : i32
    %35 = tpu.dynamic_rotate %31 by %c127_i32_20 dim 1 : vector<8x128xf32>, i32 -> vector<8x128xf32>
    %36 = vector.broadcast %3 : vector<1x128xf32> to vector<8x128xf32>
    %37 = arith.mulf %35, %36 : vector<8x128xf32>
    %38 = arith.truncf %34 : vector<8x128xf32> to vector<8x128xbf16>
    %39 = arith.truncf %31 : vector<8x128xf32> to vector<8x128xbf16>
    %40 = arith.truncf %37 : vector<8x128xf32> to vector<8x128xbf16>
    %c0_21 = arith.constant 0 : index
    %c0_22 = arith.constant 0 : index
    %c0_23 = arith.constant 0 : index
    %41 = vector.load %arg5[%c0_21, %c0_22, %c0_23] : memref<3x8x8xbf16, #tpu.memory_space<vmem>>, vector<1x8x8xbf16>
    %42 = vector.shape_cast %41 : vector<1x8x8xbf16> to vector<8x8xbf16>
    %cst_24 = arith.constant dense<0.000000e+00> : vector<8x128xf32>
    %43 = tpu.matmul %42, %38, %cst_24 {dimension_numbers = #tpu.dot_dimension_numbers<[1], [0], [0], [1], [0, 0, 1, 1], [], []>} : vector<8x8xbf16>, vector<8x128xbf16>, vector<8x128xf32> -> vector<8x128xf32>
    %c1_25 = arith.constant 1 : index
    %c0_26 = arith.constant 0 : index
    %c0_27 = arith.constant 0 : index
    %44 = vector.load %arg5[%c1_25, %c0_26, %c0_27] : memref<3x8x8xbf16, #tpu.memory_space<vmem>>, vector<1x8x8xbf16>
    %45 = vector.shape_cast %44 : vector<1x8x8xbf16> to vector<8x8xbf16>
    %cst_28 = arith.constant dense<0.000000e+00> : vector<8x128xf32>
    %46 = tpu.matmul %45, %39, %cst_28 {dimension_numbers = #tpu.dot_dimension_numbers<[1], [0], [0], [1], [0, 0, 1, 1], [], []>} : vector<8x8xbf16>, vector<8x128xbf16>, vector<8x128xf32> -> vector<8x128xf32>
    %47 = arith.addf %43, %46 : vector<8x128xf32>
    %c2_29 = arith.constant 2 : index
    %c0_30 = arith.constant 0 : index
    %c0_31 = arith.constant 0 : index
    %48 = vector.load %arg5[%c2_29, %c0_30, %c0_31] : memref<3x8x8xbf16, #tpu.memory_space<vmem>>, vector<1x8x8xbf16>
    %49 = vector.shape_cast %48 : vector<1x8x8xbf16> to vector<8x8xbf16>
    %cst_32 = arith.constant dense<0.000000e+00> : vector<8x128xf32>
    %50 = tpu.matmul %49, %40, %cst_32 {dimension_numbers = #tpu.dot_dimension_numbers<[1], [0], [0], [1], [0, 0, 1, 1], [], []>} : vector<8x8xbf16>, vector<8x128xbf16>, vector<8x128xf32> -> vector<8x128xf32>
    %51 = arith.addf %47, %50 : vector<8x128xf32>
    %c1_i32_33 = arith.constant 1 : i32
    %52 = tpu.dynamic_rotate %51 by %c1_i32_33 dim 1 : vector<8x128xf32>, i32 -> vector<8x128xf32>
    %53 = vector.broadcast %0 : vector<1x128xf32> to vector<8x128xf32>
    %54 = arith.mulf %52, %53 : vector<8x128xf32>
    %c127_i32_34 = arith.constant 127 : i32
    %55 = tpu.dynamic_rotate %51 by %c127_i32_34 dim 1 : vector<8x128xf32>, i32 -> vector<8x128xf32>
    %56 = vector.broadcast %3 : vector<1x128xf32> to vector<8x128xf32>
    %57 = arith.mulf %55, %56 : vector<8x128xf32>
    %58 = arith.truncf %54 : vector<8x128xf32> to vector<8x128xbf16>
    %59 = arith.truncf %51 : vector<8x128xf32> to vector<8x128xbf16>
    %60 = arith.truncf %57 : vector<8x128xf32> to vector<8x128xbf16>
    %c0_35 = arith.constant 0 : index
    %c0_36 = arith.constant 0 : index
    %c0_37 = arith.constant 0 : index
    %61 = vector.load %arg6[%c0_35, %c0_36, %c0_37] : memref<3x8x8xbf16, #tpu.memory_space<vmem>>, vector<1x8x8xbf16>
    %62 = vector.shape_cast %61 : vector<1x8x8xbf16> to vector<8x8xbf16>
    %cst_38 = arith.constant dense<0.000000e+00> : vector<8x128xf32>
    %63 = tpu.matmul %62, %58, %cst_38 {dimension_numbers = #tpu.dot_dimension_numbers<[1], [0], [0], [1], [0, 0, 1, 1], [], []>} : vector<8x8xbf16>, vector<8x128xbf16>, vector<8x128xf32> -> vector<8x128xf32>
    %c1_39 = arith.constant 1 : index
    %c0_40 = arith.constant 0 : index
    %c0_41 = arith.constant 0 : index
    %64 = vector.load %arg6[%c1_39, %c0_40, %c0_41] : memref<3x8x8xbf16, #tpu.memory_space<vmem>>, vector<1x8x8xbf16>
    %65 = vector.shape_cast %64 : vector<1x8x8xbf16> to vector<8x8xbf16>
    %cst_42 = arith.constant dense<0.000000e+00> : vector<8x128xf32>
    %66 = tpu.matmul %65, %59, %cst_42 {dimension_numbers = #tpu.dot_dimension_numbers<[1], [0], [0], [1], [0, 0, 1, 1], [], []>} : vector<8x8xbf16>, vector<8x128xbf16>, vector<8x128xf32> -> vector<8x128xf32>
    %67 = arith.addf %63, %66 : vector<8x128xf32>
    %c2_43 = arith.constant 2 : index
    %c0_44 = arith.constant 0 : index
    %c0_45 = arith.constant 0 : index
    %68 = vector.load %arg6[%c2_43, %c0_44, %c0_45] : memref<3x8x8xbf16, #tpu.memory_space<vmem>>, vector<1x8x8xbf16>
    %69 = vector.shape_cast %68 : vector<1x8x8xbf16> to vector<8x8xbf16>
    %cst_46 = arith.constant dense<0.000000e+00> : vector<8x128xf32>
    %70 = tpu.matmul %69, %60, %cst_46 {dimension_numbers = #tpu.dot_dimension_numbers<[1], [0], [0], [1], [0, 0, 1, 1], [], []>} : vector<8x8xbf16>, vector<8x128xbf16>, vector<8x128xf32> -> vector<8x128xf32>
    %71 = arith.addf %67, %70 : vector<8x128xf32>
    %c0_47 = arith.constant 0 : index
    %c0_48 = arith.constant 0 : index
    %72 = vector.load %arg7[%c0_47, %c0_48] : memref<8x1xf32, #tpu.memory_space<vmem>>, vector<8x1xf32>
    %73 = vector.broadcast %72 : vector<8x1xf32> to vector<8x128xf32>
    %74 = arith.addf %71, %73 : vector<8x128xf32>
    %c0_49 = arith.constant 0 : index
    %c0_50 = arith.constant 0 : index
    %c0_51 = arith.constant 0 : index
    %75 = vector.load %arg8[%c0_49, %c0_50, %c0_51] : memref<3x8x8xbf16, #tpu.memory_space<vmem>>, vector<1x8x8xbf16>
    %76 = vector.shape_cast %75 : vector<1x8x8xbf16> to vector<8x8xbf16>
    %cst_52 = arith.constant dense<0.000000e+00> : vector<8x128xf32>
    %77 = tpu.matmul %76, %10, %cst_52 {dimension_numbers = #tpu.dot_dimension_numbers<[1], [0], [0], [1], [0, 0, 1, 1], [], []>} : vector<8x8xbf16>, vector<8x128xbf16>, vector<8x128xf32> -> vector<8x128xf32>
    %c1_53 = arith.constant 1 : index
    %c0_54 = arith.constant 0 : index
    %c0_55 = arith.constant 0 : index
    %78 = vector.load %arg8[%c1_53, %c0_54, %c0_55] : memref<3x8x8xbf16, #tpu.memory_space<vmem>>, vector<1x8x8xbf16>
    %79 = vector.shape_cast %78 : vector<1x8x8xbf16> to vector<8x8xbf16>
    %cst_56 = arith.constant dense<0.000000e+00> : vector<8x128xf32>
    %80 = tpu.matmul %79, %11, %cst_56 {dimension_numbers = #tpu.dot_dimension_numbers<[1], [0], [0], [1], [0, 0, 1, 1], [], []>} : vector<8x8xbf16>, vector<8x128xbf16>, vector<8x128xf32> -> vector<8x128xf32>
    %81 = arith.addf %77, %80 : vector<8x128xf32>
    %c2_57 = arith.constant 2 : index
    %c0_58 = arith.constant 0 : index
    %c0_59 = arith.constant 0 : index
    %82 = vector.load %arg8[%c2_57, %c0_58, %c0_59] : memref<3x8x8xbf16, #tpu.memory_space<vmem>>, vector<1x8x8xbf16>
    %83 = vector.shape_cast %82 : vector<1x8x8xbf16> to vector<8x8xbf16>
    %cst_60 = arith.constant dense<0.000000e+00> : vector<8x128xf32>
    %84 = tpu.matmul %83, %12, %cst_60 {dimension_numbers = #tpu.dot_dimension_numbers<[1], [0], [0], [1], [0, 0, 1, 1], [], []>} : vector<8x8xbf16>, vector<8x128xbf16>, vector<8x128xf32> -> vector<8x128xf32>
    %85 = arith.addf %81, %84 : vector<8x128xf32>
    %86 = arith.addf %74, %85 : vector<8x128xf32>
    %cst_61 = arith.constant 0.000000e+00 : f32
    %87 = vector.broadcast %cst_61 : f32 to vector<8x128xf32>
    %88 = arith.cmpf oge, %86, %87 : vector<8x128xf32>
    %cst_62 = arith.constant 2.000000e-01 : f32
    %89 = vector.broadcast %cst_62 : f32 to vector<8x128xf32>
    %90 = arith.mulf %89, %86 : vector<8x128xf32>
    %91 = arith.select %88, %86, %90 : vector<8x128xi1>, vector<8x128xf32>
    %c0_63 = arith.constant 0 : index
    %c0_64 = arith.constant 0 : index
    %92 = vector.load %arg16[%c0_63, %c0_64] : memref<1x128xf32, #tpu.memory_space<vmem>>, vector<1x128xf32>
    %c2_i32 = arith.constant 2 : i32
    %93 = tpu.dynamic_rotate %91 by %c2_i32 dim 1 : vector<8x128xf32>, i32 -> vector<8x128xf32>
    %94 = vector.broadcast %0 : vector<1x128xf32> to vector<8x128xf32>
    %95 = arith.mulf %93, %94 : vector<8x128xf32>
    %c126_i32 = arith.constant 126 : i32
    %96 = tpu.dynamic_rotate %91 by %c126_i32 dim 1 : vector<8x128xf32>, i32 -> vector<8x128xf32>
    %97 = vector.broadcast %92 : vector<1x128xf32> to vector<8x128xf32>
    %98 = arith.mulf %96, %97 : vector<8x128xf32>
    %99 = arith.truncf %95 : vector<8x128xf32> to vector<8x128xbf16>
    %100 = arith.truncf %91 : vector<8x128xf32> to vector<8x128xbf16>
    %101 = arith.truncf %98 : vector<8x128xf32> to vector<8x128xbf16>
    %c0_65 = arith.constant 0 : index
    %c0_66 = arith.constant 0 : index
    %c0_67 = arith.constant 0 : index
    %102 = vector.load %arg10[%c0_65, %c0_66, %c0_67] : memref<3x16x8xbf16, #tpu.memory_space<vmem>>, vector<1x16x8xbf16>
    %103 = vector.shape_cast %102 : vector<1x16x8xbf16> to vector<16x8xbf16>
    %cst_68 = arith.constant dense<0.000000e+00> : vector<16x128xf32>
    %104 = tpu.matmul %103, %99, %cst_68 {dimension_numbers = #tpu.dot_dimension_numbers<[1], [0], [0], [1], [0, 0, 1, 1], [], []>} : vector<16x8xbf16>, vector<8x128xbf16>, vector<16x128xf32> -> vector<16x128xf32>
    %c1_69 = arith.constant 1 : index
    %c0_70 = arith.constant 0 : index
    %c0_71 = arith.constant 0 : index
    %105 = vector.load %arg10[%c1_69, %c0_70, %c0_71] : memref<3x16x8xbf16, #tpu.memory_space<vmem>>, vector<1x16x8xbf16>
    %106 = vector.shape_cast %105 : vector<1x16x8xbf16> to vector<16x8xbf16>
    %cst_72 = arith.constant dense<0.000000e+00> : vector<16x128xf32>
    %107 = tpu.matmul %106, %100, %cst_72 {dimension_numbers = #tpu.dot_dimension_numbers<[1], [0], [0], [1], [0, 0, 1, 1], [], []>} : vector<16x8xbf16>, vector<8x128xbf16>, vector<16x128xf32> -> vector<16x128xf32>
    %108 = arith.addf %104, %107 : vector<16x128xf32>
    %c2_73 = arith.constant 2 : index
    %c0_74 = arith.constant 0 : index
    %c0_75 = arith.constant 0 : index
    %109 = vector.load %arg10[%c2_73, %c0_74, %c0_75] : memref<3x16x8xbf16, #tpu.memory_space<vmem>>, vector<1x16x8xbf16>
    %110 = vector.shape_cast %109 : vector<1x16x8xbf16> to vector<16x8xbf16>
    %cst_76 = arith.constant dense<0.000000e+00> : vector<16x128xf32>
    %111 = tpu.matmul %110, %101, %cst_76 {dimension_numbers = #tpu.dot_dimension_numbers<[1], [0], [0], [1], [0, 0, 1, 1], [], []>} : vector<16x8xbf16>, vector<8x128xbf16>, vector<16x128xf32> -> vector<16x128xf32>
    %112 = arith.addf %108, %111 : vector<16x128xf32>
    %c0_77 = arith.constant 0 : index
    %c0_78 = arith.constant 0 : index
    %113 = vector.load %arg11[%c0_77, %c0_78] : memref<16x1xf32, #tpu.memory_space<vmem>>, vector<16x1xf32>
    %114 = vector.broadcast %113 : vector<16x1xf32> to vector<16x128xf32>
    %115 = arith.addf %112, %114 : vector<16x128xf32>
    %cst_79 = arith.constant 0.000000e+00 : f32
    %116 = vector.broadcast %cst_79 : f32 to vector<16x128xf32>
    %117 = arith.cmpf oge, %115, %116 : vector<16x128xf32>
    %cst_80 = arith.constant 2.000000e-01 : f32
    %118 = vector.broadcast %cst_80 : f32 to vector<16x128xf32>
    %119 = arith.mulf %118, %115 : vector<16x128xf32>
    %120 = arith.select %117, %115, %119 : vector<16x128xi1>, vector<16x128xf32>
    %c2_i32_81 = arith.constant 2 : i32
    %121 = tpu.dynamic_rotate %120 by %c2_i32_81 dim 1 : vector<16x128xf32>, i32 -> vector<16x128xf32>
    %122 = vector.broadcast %0 : vector<1x128xf32> to vector<16x128xf32>
    %123 = arith.mulf %121, %122 : vector<16x128xf32>
    %c126_i32_82 = arith.constant 126 : i32
    %124 = tpu.dynamic_rotate %120 by %c126_i32_82 dim 1 : vector<16x128xf32>, i32 -> vector<16x128xf32>
    %125 = vector.broadcast %92 : vector<1x128xf32> to vector<16x128xf32>
    %126 = arith.mulf %124, %125 : vector<16x128xf32>
    %127 = arith.truncf %123 : vector<16x128xf32> to vector<16x128xbf16>
    %128 = arith.truncf %120 : vector<16x128xf32> to vector<16x128xbf16>
    %129 = arith.truncf %126 : vector<16x128xf32> to vector<16x128xbf16>
    %c0_83 = arith.constant 0 : index
    %c0_84 = arith.constant 0 : index
    %c0_85 = arith.constant 0 : index
    %130 = vector.load %arg12[%c0_83, %c0_84, %c0_85] : memref<3x16x16xbf16, #tpu.memory_space<vmem>>, vector<1x16x16xbf16>
    %131 = vector.shape_cast %130 : vector<1x16x16xbf16> to vector<16x16xbf16>
    %cst_86 = arith.constant dense<0.000000e+00> : vector<16x128xf32>
    %132 = tpu.matmul %131, %127, %cst_86 {dimension_numbers = #tpu.dot_dimension_numbers<[1], [0], [0], [1], [0, 0, 1, 1], [], []>} : vector<16x16xbf16>, vector<16x128xbf16>, vector<16x128xf32> -> vector<16x128xf32>
    %c1_87 = arith.constant 1 : index
    %c0_88 = arith.constant 0 : index
    %c0_89 = arith.constant 0 : index
    %133 = vector.load %arg12[%c1_87, %c0_88, %c0_89] : memref<3x16x16xbf16, #tpu.memory_space<vmem>>, vector<1x16x16xbf16>
    %134 = vector.shape_cast %133 : vector<1x16x16xbf16> to vector<16x16xbf16>
    %cst_90 = arith.constant dense<0.000000e+00> : vector<16x128xf32>
    %135 = tpu.matmul %134, %128, %cst_90 {dimension_numbers = #tpu.dot_dimension_numbers<[1], [0], [0], [1], [0, 0, 1, 1], [], []>} : vector<16x16xbf16>, vector<16x128xbf16>, vector<16x128xf32> -> vector<16x128xf32>
    %136 = arith.addf %132, %135 : vector<16x128xf32>
    %c2_91 = arith.constant 2 : index
    %c0_92 = arith.constant 0 : index
    %c0_93 = arith.constant 0 : index
    %137 = vector.load %arg12[%c2_91, %c0_92, %c0_93] : memref<3x16x16xbf16, #tpu.memory_space<vmem>>, vector<1x16x16xbf16>
    %138 = vector.shape_cast %137 : vector<1x16x16xbf16> to vector<16x16xbf16>
    %cst_94 = arith.constant dense<0.000000e+00> : vector<16x128xf32>
    %139 = tpu.matmul %138, %129, %cst_94 {dimension_numbers = #tpu.dot_dimension_numbers<[1], [0], [0], [1], [0, 0, 1, 1], [], []>} : vector<16x16xbf16>, vector<16x128xbf16>, vector<16x128xf32> -> vector<16x128xf32>
    %140 = arith.addf %136, %139 : vector<16x128xf32>
    %c2_i32_95 = arith.constant 2 : i32
    %141 = tpu.dynamic_rotate %140 by %c2_i32_95 dim 1 : vector<16x128xf32>, i32 -> vector<16x128xf32>
    %142 = vector.broadcast %0 : vector<1x128xf32> to vector<16x128xf32>
    %143 = arith.mulf %141, %142 : vector<16x128xf32>
    %c126_i32_96 = arith.constant 126 : i32
    %144 = tpu.dynamic_rotate %140 by %c126_i32_96 dim 1 : vector<16x128xf32>, i32 -> vector<16x128xf32>
    %145 = vector.broadcast %92 : vector<1x128xf32> to vector<16x128xf32>
    %146 = arith.mulf %144, %145 : vector<16x128xf32>
    %147 = arith.truncf %143 : vector<16x128xf32> to vector<16x128xbf16>
    %148 = arith.truncf %140 : vector<16x128xf32> to vector<16x128xbf16>
    %149 = arith.truncf %146 : vector<16x128xf32> to vector<16x128xbf16>
    %c0_97 = arith.constant 0 : index
    %c0_98 = arith.constant 0 : index
    %c0_99 = arith.constant 0 : index
    %150 = vector.load %arg13[%c0_97, %c0_98, %c0_99] : memref<3x16x16xbf16, #tpu.memory_space<vmem>>, vector<1x16x16xbf16>
    %151 = vector.shape_cast %150 : vector<1x16x16xbf16> to vector<16x16xbf16>
    %cst_100 = arith.constant dense<0.000000e+00> : vector<16x128xf32>
    %152 = tpu.matmul %151, %147, %cst_100 {dimension_numbers = #tpu.dot_dimension_numbers<[1], [0], [0], [1], [0, 0, 1, 1], [], []>} : vector<16x16xbf16>, vector<16x128xbf16>, vector<16x128xf32> -> vector<16x128xf32>
    %c1_101 = arith.constant 1 : index
    %c0_102 = arith.constant 0 : index
    %c0_103 = arith.constant 0 : index
    %153 = vector.load %arg13[%c1_101, %c0_102, %c0_103] : memref<3x16x16xbf16, #tpu.memory_space<vmem>>, vector<1x16x16xbf16>
    %154 = vector.shape_cast %153 : vector<1x16x16xbf16> to vector<16x16xbf16>
    %cst_104 = arith.constant dense<0.000000e+00> : vector<16x128xf32>
    %155 = tpu.matmul %154, %148, %cst_104 {dimension_numbers = #tpu.dot_dimension_numbers<[1], [0], [0], [1], [0, 0, 1, 1], [], []>} : vector<16x16xbf16>, vector<16x128xbf16>, vector<16x128xf32> -> vector<16x128xf32>
    %156 = arith.addf %152, %155 : vector<16x128xf32>
    %c2_105 = arith.constant 2 : index
    %c0_106 = arith.constant 0 : index
    %c0_107 = arith.constant 0 : index
    %157 = vector.load %arg13[%c2_105, %c0_106, %c0_107] : memref<3x16x16xbf16, #tpu.memory_space<vmem>>, vector<1x16x16xbf16>
    %158 = vector.shape_cast %157 : vector<1x16x16xbf16> to vector<16x16xbf16>
    %cst_108 = arith.constant dense<0.000000e+00> : vector<16x128xf32>
    %159 = tpu.matmul %158, %149, %cst_108 {dimension_numbers = #tpu.dot_dimension_numbers<[1], [0], [0], [1], [0, 0, 1, 1], [], []>} : vector<16x16xbf16>, vector<16x128xbf16>, vector<16x128xf32> -> vector<16x128xf32>
    %160 = arith.addf %156, %159 : vector<16x128xf32>
    %c0_109 = arith.constant 0 : index
    %c0_110 = arith.constant 0 : index
    %161 = vector.load %arg14[%c0_109, %c0_110] : memref<16x1xf32, #tpu.memory_space<vmem>>, vector<16x1xf32>
    %162 = vector.broadcast %161 : vector<16x1xf32> to vector<16x128xf32>
    %163 = arith.addf %160, %162 : vector<16x128xf32>
    %c0_111 = arith.constant 0 : index
    %c0_112 = arith.constant 0 : index
    %c0_113 = arith.constant 0 : index
    %164 = vector.load %arg15[%c0_111, %c0_112, %c0_113] : memref<3x16x8xbf16, #tpu.memory_space<vmem>>, vector<1x16x8xbf16>
    %165 = vector.shape_cast %164 : vector<1x16x8xbf16> to vector<16x8xbf16>
    %cst_114 = arith.constant dense<0.000000e+00> : vector<16x128xf32>
    %166 = tpu.matmul %165, %99, %cst_114 {dimension_numbers = #tpu.dot_dimension_numbers<[1], [0], [0], [1], [0, 0, 1, 1], [], []>} : vector<16x8xbf16>, vector<8x128xbf16>, vector<16x128xf32> -> vector<16x128xf32>
    %c1_115 = arith.constant 1 : index
    %c0_116 = arith.constant 0 : index
    %c0_117 = arith.constant 0 : index
    %167 = vector.load %arg15[%c1_115, %c0_116, %c0_117] : memref<3x16x8xbf16, #tpu.memory_space<vmem>>, vector<1x16x8xbf16>
    %168 = vector.shape_cast %167 : vector<1x16x8xbf16> to vector<16x8xbf16>
    %cst_118 = arith.constant dense<0.000000e+00> : vector<16x128xf32>
    %169 = tpu.matmul %168, %100, %cst_118 {dimension_numbers = #tpu.dot_dimension_numbers<[1], [0], [0], [1], [0, 0, 1, 1], [], []>} : vector<16x8xbf16>, vector<8x128xbf16>, vector<16x128xf32> -> vector<16x128xf32>
    %170 = arith.addf %166, %169 : vector<16x128xf32>
    %c2_119 = arith.constant 2 : index
    %c0_120 = arith.constant 0 : index
    %c0_121 = arith.constant 0 : index
    %171 = vector.load %arg15[%c2_119, %c0_120, %c0_121] : memref<3x16x8xbf16, #tpu.memory_space<vmem>>, vector<1x16x8xbf16>
    %172 = vector.shape_cast %171 : vector<1x16x8xbf16> to vector<16x8xbf16>
    %cst_122 = arith.constant dense<0.000000e+00> : vector<16x128xf32>
    %173 = tpu.matmul %172, %101, %cst_122 {dimension_numbers = #tpu.dot_dimension_numbers<[1], [0], [0], [1], [0, 0, 1, 1], [], []>} : vector<16x8xbf16>, vector<8x128xbf16>, vector<16x128xf32> -> vector<16x128xf32>
    %174 = arith.addf %170, %173 : vector<16x128xf32>
    %175 = arith.addf %163, %174 : vector<16x128xf32>
    %cst_123 = arith.constant 0.000000e+00 : f32
    %176 = vector.broadcast %cst_123 : f32 to vector<16x128xf32>
    %177 = arith.cmpf oge, %175, %176 : vector<16x128xf32>
    %cst_124 = arith.constant 2.000000e-01 : f32
    %178 = vector.broadcast %cst_124 : f32 to vector<16x128xf32>
    %179 = arith.mulf %178, %175 : vector<16x128xf32>
    %180 = arith.select %177, %175, %179 : vector<16x128xi1>, vector<16x128xf32>
    %c0_125 = arith.constant 0 : index
    %c0_126 = arith.constant 0 : index
    %c0_127 = arith.constant 0 : index
    %181 = vector.load %arg17[%c0_125, %c0_126, %c0_127] : memref<1x16x128xf32, #tpu.memory_space<vmem>>, vector<1x16x128xf32>
    %182 = vector.shape_cast %181 : vector<1x16x128xf32> to vector<16x128xf32>
    %183 = vector.shape_cast %180 : vector<16x128xf32> to vector<1x16x128xf32>
    tpu.vector_store %arg17[%c0_125, %c0_126, %c0_127], %183 {strides = array<i32>} : memref<1x16x128xf32, #tpu.memory_space<vmem>>, vector<1x16x128xf32>,
    return
  }
  func.func @transform_0(%arg0: i32) -> (i32, i32, i32) {
    %c0_i32 = arith.constant 0 : i32
    %c0_i32_0 = arith.constant 0 : i32
    %c0_i32_1 = arith.constant 0 : i32
    return %arg0, %c0_i32, %c0_i32_0 : i32, i32, i32
  }
  func.func @transform_1(%arg0: i32) -> (i32, i32) {
    %c0_i32 = arith.constant 0 : i32
    %c0_i32_0 = arith.constant 0 : i32
    %c0_i32_1 = arith.constant 0 : i32
    return %c0_i32, %c0_i32_0 : i32, i32
  }
  func.func @transform_2(%arg0: i32) -> (i32, i32, i32) {
    %c0_i32 = arith.constant 0 : i32
    %c0_i32_0 = arith.constant 0 : i32
    %c0_i32_1 = arith.constant 0 : i32
    %c0_i32_2 = arith.constant 0 : i32
    return %c0_i32, %c0_i32_0, %c0_i32_1 : i32, i32, i32
  }
  func.func @transform_3(%arg0: i32) -> (i32, i32) {
    %c0_i32 = arith.constant 0 : i32
    %c0_i32_0 = arith.constant 0 : i32
    %c0_i32_1 = arith.constant 0 : i32
    return %c0_i32, %c0_i32_0 : i32, i32
  }
  func.func @transform_4(%arg0: i32) -> (i32, i32, i32) {
    %c0_i32 = arith.constant 0 : i32
    %c0_i32_0 = arith.constant 0 : i32
    %c0_i32_1 = arith.constant 0 : i32
    %c0_i32_2 = arith.constant 0 : i32
    return %c0_i32, %c0_i32_0, %c0_i32_1 : i32, i32, i32
  }
  func.func @transform_5(%arg0: i32) -> (i32, i32, i32) {
    %c0_i32 = arith.constant 0 : i32
    %c0_i32_0 = arith.constant 0 : i32
    %c0_i32_1 = arith.constant 0 : i32
    %c0_i32_2 = arith.constant 0 : i32
    return %c0_i32, %c0_i32_0, %c0_i32_1 : i32, i32, i32
  }
  func.func @transform_6(%arg0: i32) -> (i32, i32) {
    %c0_i32 = arith.constant 0 : i32
    %c0_i32_0 = arith.constant 0 : i32
    %c0_i32_1 = arith.constant 0 : i32
    return %c0_i32, %c0_i32_0 : i32, i32
  }
  func.func @transform_7(%arg0: i32) -> (i32, i32, i32) {
    %c0_i32 = arith.constant 0 : i32
    %c0_i32_0 = arith.constant 0 : i32
    %c0_i32_1 = arith.constant 0 : i32
    %c0_i32_2 = arith.constant 0 : i32
    return %c0_i32, %c0_i32_0, %c0_i32_1 : i32, i32, i32
  }
  func.func @transform_8(%arg0: i32) -> (i32, i32) {
    %c0_i32 = arith.constant 0 : i32
    %c0_i32_0 = arith.constant 0 : i32
    %c0_i32_1 = arith.constant 0 : i32
    return %c0_i32, %c0_i32_0 : i32, i32
  }
  func.func @transform_9(%arg0: i32) -> (i32, i32, i32) {
    %c0_i32 = arith.constant 0 : i32
    %c0_i32_0 = arith.constant 0 : i32
    %c0_i32_1 = arith.constant 0 : i32
    %c0_i32_2 = arith.constant 0 : i32
    return %c0_i32, %c0_i32_0, %c0_i32_1 : i32, i32, i32
  }
  func.func @transform_10(%arg0: i32) -> (i32, i32) {
    %c0_i32 = arith.constant 0 : i32
    %c0_i32_0 = arith.constant 0 : i32
    %c0_i32_1 = arith.constant 0 : i32
    return %c0_i32, %c0_i32_0 : i32, i32
  }
  func.func @transform_11(%arg0: i32) -> (i32, i32, i32) {
    %c0_i32 = arith.constant 0 : i32
    %c0_i32_0 = arith.constant 0 : i32
    %c0_i32_1 = arith.constant 0 : i32
    %c0_i32_2 = arith.constant 0 : i32
    return %c0_i32, %c0_i32_0, %c0_i32_1 : i32, i32, i32
  }
  func.func @transform_12(%arg0: i32) -> (i32, i32, i32) {
    %c0_i32 = arith.constant 0 : i32
    %c0_i32_0 = arith.constant 0 : i32
    %c0_i32_1 = arith.constant 0 : i32
    %c0_i32_2 = arith.constant 0 : i32
    return %c0_i32, %c0_i32_0, %c0_i32_1 : i32, i32, i32
  }
  func.func @transform_13(%arg0: i32) -> (i32, i32) {
    %c0_i32 = arith.constant 0 : i32
    %c0_i32_0 = arith.constant 0 : i32
    %c0_i32_1 = arith.constant 0 : i32
    return %c0_i32, %c0_i32_0 : i32, i32
  }
  func.func @transform_14(%arg0: i32) -> (i32, i32, i32) {
    %c0_i32 = arith.constant 0 : i32
    %c0_i32_0 = arith.constant 0 : i32
    %c0_i32_1 = arith.constant 0 : i32
    %c0_i32_2 = arith.constant 0 : i32
    return %c0_i32, %c0_i32_0, %c0_i32_1 : i32, i32, i32
  }
  func.func @transform_15(%arg0: i32) -> (i32, i32) {
    %c0_i32 = arith.constant 0 : i32
    %c0_i32_0 = arith.constant 0 : i32
    %c0_i32_1 = arith.constant 0 : i32
    return %c0_i32, %c0_i32_0 : i32, i32
  }
  func.func @transform_16(%arg0: i32) -> (i32, i32, i32) {
    %c0_i32 = arith.constant 0 : i32
    %c0_i32_0 = arith.constant 0 : i32
    %c0_i32_1 = arith.constant 0 : i32
    return %arg0, %c0_i32, %c0_i32_0 : i32, i32, i32
  }
}

</mosaic_0001>

<llo_original>
// kernel: _lambda_.1
$region0: #{_lambda_.1}
  #allocation0 [shape = 'u32[]', space=smem, size = 0x4, offset = 0x4, fixed_abs, tag = 'smem constant byte address 0x4 - core index']
  #allocation1 [shape = 'u32[144,128]{1,0:T(1,128)}', space=vmem, size = 0x12000, scoped, tag = 'internal scratch']
  %s0 = inlined_call_operand.vmem [shape: f32[1,8,128], index: 0, kind: input, shape index: {}]
  %s1 = inlined_call_operand.vmem [shape: f32[1,128], index: 1, kind: input, shape index: {}]
  %s2 = inlined_call_operand.vmem [shape: bf16[3,8,8], index: 2, kind: input, shape index: {}]
  %s3 = inlined_call_operand.vmem [shape: f32[8,1], index: 3, kind: input, shape index: {}]
  %s4 = inlined_call_operand.vmem [shape: bf16[3,8,8], index: 4, kind: input, shape index: {}]
  %s5 = inlined_call_operand.vmem [shape: bf16[3,8,8], index: 5, kind: input, shape index: {}]
  %s6 = inlined_call_operand.vmem [shape: f32[8,1], index: 6, kind: input, shape index: {}]
  %s7 = inlined_call_operand.vmem [shape: bf16[3,8,8], index: 7, kind: input, shape index: {}]
  %s8 = inlined_call_operand.vmem [shape: f32[1,128], index: 8, kind: input, shape index: {}]
  %s9 = inlined_call_operand.vmem [shape: bf16[3,16,8], index: 9, kind: input, shape index: {}]
  %s10 = inlined_call_operand.vmem [shape: f32[16,1], index: 10, kind: input, shape index: {}]
  %s11 = inlined_call_operand.vmem [shape: bf16[3,16,16], index: 11, kind: input, shape index: {}]
  %s12 = inlined_call_operand.vmem [shape: bf16[3,16,16], index: 12, kind: input, shape index: {}]
  %s13 = inlined_call_operand.vmem [shape: f32[16,1], index: 13, kind: input, shape index: {}]
  %s14 = inlined_call_operand.vmem [shape: bf16[3,16,8], index: 14, kind: input, shape index: {}]
  %s15 = inlined_call_operand.vmem [shape: f32[1,128], index: 15, kind: input, shape index: {}]
  %s16 = inlined_call_operand.vmem [shape: f32[1,16,128], index: 16, kind: output, shape index: {}]
  %s17 = sld [smem:[#allocation0]]
  $region74: #{_lambda_.1} parent=0
    _
  %s19 = ssub.s32 1, %s17
  %s20 = scalar_select 0, %s19, %s17
  // Predicated region
  $region2: #{_lambda_.1} parent=0 // pred_check
    _
  $region3: #{_lambda_.1} parent=0 // pred_check_branch
    %22 = sbr.rel (0) target = $region5
  $region4: #{_lambda_.1} parent=0 // pred_region
    _
  $region5: #{_lambda_.1} parent=0 // pred_fallthru
    _
  // Predicated region
  $region6: #{_lambda_.1} parent=0 // pred_check
    _
  $region7: #{_lambda_.1} parent=0 // pred_check_branch
    %24 = sbr.rel (0) target = $region9
  $region8: #{_lambda_.1} parent=0 // pred_region
    _
  $region9: #{_lambda_.1} parent=0 // pred_fallthru
    _
  // Predicated region
  $region10: #{_lambda_.1} parent=0 // pred_check
    _
  $region11: #{_lambda_.1} parent=0 // pred_check_branch
    %26 = sbr.rel (0) target = $region13
  $region12: #{_lambda_.1} parent=0 // pred_region
    _
  $region13: #{_lambda_.1} parent=0 // pred_fallthru
    _
  // Predicated region
  $region14: #{_lambda_.1} parent=0 // pred_check
    _
  $region15: #{_lambda_.1} parent=0 // pred_check_branch
    %28 = sbr.rel (0) target = $region17
  $region16: #{_lambda_.1} parent=0 // pred_region
    _
  $region17: #{_lambda_.1} parent=0 // pred_fallthru
    _
  // Predicated region
  $region18: #{_lambda_.1} parent=0 // pred_check
    _
  $region19: #{_lambda_.1} parent=0 // pred_check_branch
    %30 = sbr.rel (0) target = $region21
  $region20: #{_lambda_.1} parent=0 // pred_region
    _
  $region21: #{_lambda_.1} parent=0 // pred_fallthru
    _
  // Predicated region
  $region22: #{_lambda_.1} parent=0 // pred_check
    _
  $region23: #{_lambda_.1} parent=0 // pred_check_branch
    %32 = sbr.rel (0) target = $region25
  $region24: #{_lambda_.1} parent=0 // pred_region
    _
  $region25: #{_lambda_.1} parent=0 // pred_fallthru
    _
  // Predicated region
  $region26: #{_lambda_.1} parent=0 // pred_check
    _
  $region27: #{_lambda_.1} parent=0 // pred_check_branch
    %34 = sbr.rel (0) target = $region29
  $region28: #{_lambda_.1} parent=0 // pred_region
    _
  $region29: #{_lambda_.1} parent=0 // pred_fallthru
    _
  // Predicated region
  $region30: #{_lambda_.1} parent=0 // pred_check
    _
  $region31: #{_lambda_.1} parent=0 // pred_check_branch
    %36 = sbr.rel (0) target = $region33
  $region32: #{_lambda_.1} parent=0 // pred_region
    _
  $region33: #{_lambda_.1} parent=0 // pred_fallthru
    _
  // Predicated region
  $region34: #{_lambda_.1} parent=0 // pred_check
    _
  $region35: #{_lambda_.1} parent=0 // pred_check_branch
    %38 = sbr.rel (0) target = $region37
  $region36: #{_lambda_.1} parent=0 // pred_region
    _
  $region37: #{_lambda_.1} parent=0 // pred_fallthru
    _
  // Predicated region
  $region38: #{_lambda_.1} parent=0 // pred_check
    _
  $region39: #{_lambda_.1} parent=0 // pred_check_branch
    %40 = sbr.rel (0) target = $region41
  $region40: #{_lambda_.1} parent=0 // pred_region
    _
  $region41: #{_lambda_.1} parent=0 // pred_fallthru
    _
  // Predicated region
  $region42: #{_lambda_.1} parent=0 // pred_check
    _
  $region43: #{_lambda_.1} parent=0 // pred_check_branch
    %42 = sbr.rel (0) target = $region45
  $region44: #{_lambda_.1} parent=0 // pred_region
    _
  $region45: #{_lambda_.1} parent=0 // pred_fallthru
    _
  // Predicated region
  $region46: #{_lambda_.1} parent=0 // pred_check
    _
  $region47: #{_lambda_.1} parent=0 // pred_check_branch
    %44 = sbr.rel (0) target = $region49
  $region48: #{_lambda_.1} parent=0 // pred_region
    _
  $region49: #{_lambda_.1} parent=0 // pred_fallthru
    _
  // Predicated region
  $region50: #{_lambda_.1} parent=0 // pred_check
    _
  $region51: #{_lambda_.1} parent=0 // pred_check_branch
    %46 = sbr.rel (0) target = $region53
  $region52: #{_lambda_.1} parent=0 // pred_region
    _
  $region53: #{_lambda_.1} parent=0 // pred_fallthru
    _
  // Predicated region
  $region54: #{_lambda_.1} parent=0 // pred_check
    _
  $region55: #{_lambda_.1} parent=0 // pred_check_branch
    %48 = sbr.rel (0) target = $region57
  $region56: #{_lambda_.1} parent=0 // pred_region
    _
  $region57: #{_lambda_.1} parent=0 // pred_fallthru
    _
  // Predicated region
  $region58: #{_lambda_.1} parent=0 // pred_check
    _
  $region59: #{_lambda_.1} parent=0 // pred_check_branch
    %50 = sbr.rel (0) target = $region61
  $region60: #{_lambda_.1} parent=0 // pred_region
    _
  $region61: #{_lambda_.1} parent=0 // pred_fallthru
    _
  // Predicated region
  $region62: #{_lambda_.1} parent=0 // pred_check
    _
  $region63: #{_lambda_.1} parent=0 // pred_check_branch
    %52 = sbr.rel (0) target = $region65
  $region64: #{_lambda_.1} parent=0 // pred_region
    _
  $region65: #{_lambda_.1} parent=0 // pred_fallthru
    _
  %v54 = vld [vmem:[%s1] sm:$0x1]
  %v55 = vld [vmem:[%s0] sm:$0xff]
  %v56 = vld [vmem:[%s8] sm:$0x1]
  %57 = vrot.lane.b32.xlu0 %v55, 1
  %v58 = vpop.permute.xlu0 %57
  %v60 = vlaneseq
  %v61 = vshrl.u32 %v60, 7
  %v62 = vsub.s32 0, %v61
  %v63 = vrot.slane %v54, %v62
  %v65 = vmul.f32 %v58, %v63
  %66 = vrot.lane.b32.xlu0 %v55, 127
  %v67 = vpop.permute.xlu0 %66
  %v69 = vlaneseq
  %v70 = vshrl.u32 %v69, 7
  %v71 = vsub.s32 0, %v70
  %v72 = vrot.slane %v56, %v71
  %v74 = vmul.f32 %v67, %v72
  %v75 = vpack.c.bf16 %v65, %v65
  %v76 = vpack.c.bf16 %v55, %v55
  %v77 = vpack.c.bf16 %v74, %v74
  %v78 = vld [vmem:[%s2] sm:$0xf]
  %s79 = scalar_lea.vmem %s2, 4
  %v80 = vld [vmem:[%s79] sm:$0xf]
  %vm81 = vcmask 64512
  %v83 = vsel %vm81, %v80, 0
  %vm85 = vcmask 1043456
  %v87 = vsel %vm85, %v76, 0
  %89 = vmatprep.subr.bf16.mxu0 0
  %90 = vmatpush1.bf16.msra.mxu0 %v87
  %91 = vmatprep.subr.bf16.mxu0 0
  %92 = vmatpush1.bf16.msra.mxu0 0
  %93 = vmatprep.subr.bf16.mxu0 0
  %94 = vmatpush1.bf16.msra.mxu0 0
  %95 = vmatprep.subr.bf16.mxu0 0
  %96 = vmatpush1.bf16.msra.mxu0 0
  %97 = vmatprep.subr.bf16.mxu0 0
  %98 = vmatpush1.bf16.msra.mxu0 0
  %99 = vmatprep.subr.bf16.mxu0 0
  %100 = vmatpush1.bf16.msra.mxu0 0
  %101 = vmatprep.subr.bf16.mxu0 0
  %102 = vmatpush1.bf16.msra.mxu0 0
  %103 = vmatprep.subr.bf16.mxu0 0
  %104 = vmatpush1.bf16.msra.mxu0 0
  %105 = vmatprep.subr.bf16.mxu0 0
  %106 = vmatpush1.bf16.msra.mxu0 0
  %107 = vmatprep.subr.bf16.mxu0 0
  %108 = vmatpush1.bf16.msra.mxu0 0
  %109 = vmatprep.subr.bf16.mxu0 0
  %110 = vmatpush1.bf16.msra.mxu0 0
  %111 = vmatprep.subr.bf16.mxu0 0
  %112 = vmatpush1.bf16.msra.mxu0 0
  %113 = vmatprep.subr.bf16.mxu0 0
  %114 = vmatpush1.bf16.msra.mxu0 0
  %115 = vmatprep.subr.bf16.mxu0 0
  %116 = vmatpush1.bf16.msra.mxu0 0
  %117 = vmatprep.subr.bf16.mxu0 0
  %118 = vmatpush1.bf16.msra.mxu0 0
  %119 = vmatprep.subr.bf16.mxu0 0
  %120 = vmatpush1.bf16.msra.mxu0 0
  %121 = vmatprep.mubr.bf16.mxu0 0
  %122 = vmatmul.mubr.bf16.gmra.mrb[0].mxu0 %v83
  %v123 = vpop.f32.mrb[0].mxu0
  %v124 = vadd.f32 0.0, %v123
  %v125 = vpop.f32.mrb[0].mxu0
  %v126 = vpop.f32.mrb[0].mxu0
  %v127 = vpop.f32.mrb[0].mxu0
  %128 = vdwg.mxu0
  %v130 = vsel %vm81, %v78, 0
  %v133 = vsel %vm85, %v75, 0
  %135 = vmatprep.subr.bf16.mxu0 0
  %136 = vmatpush1.bf16.msra.mxu0 %v133
  %137 = vmatprep.subr.bf16.mxu0 0
  %138 = vmatpush1.bf16.msra.mxu0 0
  %139 = vmatprep.subr.bf16.mxu0 0
  %140 = vmatpush1.bf16.msra.mxu0 0
  %141 = vmatprep.subr.bf16.mxu0 0
  %142 = vmatpush1.bf16.msra.mxu0 0
  %143 = vmatprep.subr.bf16.mxu0 0
  %144 = vmatpush1.bf16.msra.mxu0 0
  %145 = vmatprep.subr.bf16.mxu0 0
  %146 = vmatpush1.bf16.msra.mxu0 0
  %147 = vmatprep.subr.bf16.mxu0 0
  %148 = vmatpush1.bf16.msra.mxu0 0
  %149 = vmatprep.subr.bf16.mxu0 0
  %150 = vmatpush1.bf16.msra.mxu0 0
  %151 = vmatprep.subr.bf16.mxu0 0
  %152 = vmatpush1.bf16.msra.mxu0 0
  %153 = vmatprep.subr.bf16.mxu0 0
  %154 = vmatpush1.bf16.msra.mxu0 0
  %155 = vmatprep.subr.bf16.mxu0 0
  %156 = vmatpush1.bf16.msra.mxu0 0
  %157 = vmatprep.subr.bf16.mxu0 0
  %158 = vmatpush1.bf16.msra.mxu0 0
  %159 = vmatprep.subr.bf16.mxu0 0
  %160 = vmatpush1.bf16.msra.mxu0 0
  %161 = vmatprep.subr.bf16.mxu0 0
  %162 = vmatpush1.bf16.msra.mxu0 0
  %163 = vmatprep.subr.bf16.mxu0 0
  %164 = vmatpush1.bf16.msra.mxu0 0
  %165 = vmatprep.subr.bf16.mxu0 0
  %166 = vmatpush1.bf16.msra.mxu0 0
  %167 = vmatprep.mubr.bf16.mxu0 0
  %168 = vmatmul.mubr.bf16.gmra.mrb[0].mxu0 %v130
  %v169 = vpop.f32.mrb[0].mxu0
  %v170 = vadd.f32 %v124, %v169
  %v171 = vpop.f32.mrb[0].mxu0
  %v172 = vpop.f32.mrb[0].mxu0
  %v173 = vpop.f32.mrb[0].mxu0
  %174 = vdwg.mxu0
  %s175 = scalar_lea.vmem %s2, 8
  %v176 = vld [vmem:[%s175] sm:$0xf]
  %v178 = vsel %vm81, %v176, 0
  %v181 = vsel %vm85, %v77, 0
  %183 = vmatprep.subr.bf16.mxu0 0
  %184 = vmatpush1.bf16.msra.mxu0 %v181
  %185 = vmatprep.subr.bf16.mxu0 0
  %186 = vmatpush1.bf16.msra.mxu0 0
  %187 = vmatprep.subr.bf16.mxu0 0
  %188 = vmatpush1.bf16.msra.mxu0 0
  %189 = vmatprep.subr.bf16.mxu0 0
  %190 = vmatpush1.bf16.msra.mxu0 0
  %191 = vmatprep.subr.bf16.mxu0 0
  %192 = vmatpush1.bf16.msra.mxu0 0
  %193 = vmatprep.subr.bf16.mxu0 0
  %194 = vmatpush1.bf16.msra.mxu0 0
  %195 = vmatprep.subr.bf16.mxu0 0
  %196 = vmatpush1.bf16.msra.mxu0 0
  %197 = vmatprep.subr.bf16.mxu0 0
  %198 = vmatpush1.bf16.msra.mxu0 0
  %199 = vmatprep.subr.bf16.mxu0 0
  %200 = vmatpush1.bf16.msra.mxu0 0
  %201 = vmatprep.subr.bf16.mxu0 0
  %202 = vmatpush1.bf16.msra.mxu0 0
  %203 = vmatprep.subr.bf16.mxu0 0
  %204 = vmatpush1.bf16.msra.mxu0 0
  %205 = vmatprep.subr.bf16.mxu0 0
  %206 = vmatpush1.bf16.msra.mxu0 0
  %207 = vmatprep.subr.bf16.mxu0 0
  %208 = vmatpush1.bf16.msra.mxu0 0
  %209 = vmatprep.subr.bf16.mxu0 0
  %210 = vmatpush1.bf16.msra.mxu0 0
  %211 = vmatprep.subr.bf16.mxu0 0
  %212 = vmatpush1.bf16.msra.mxu0 0
  %213 = vmatprep.subr.bf16.mxu0 0
  %214 = vmatpush1.bf16.msra.mxu0 0
  %215 = vmatprep.mubr.bf16.mxu0 0
  %216 = vmatmul.mubr.bf16.gmra.mrb[0].mxu0 %v178
  %v217 = vpop.f32.mrb[0].mxu0
  %v218 = vadd.f32 0.0, %v217
  %v219 = vpop.f32.mrb[0].mxu0
  %v220 = vpop.f32.mrb[0].mxu0
  %v221 = vpop.f32.mrb[0].mxu0
  %222 = vdwg.mxu0
  %v223 = vadd.f32 %v170, %v218
  %v224 = vld [vmem:[%s3] sm:$0xff]
  %226 = vset.pattern.permute.xlu0 0
  %227 = vperm.xlu0 %226, %v224
  %v228 = vpop.permute.xlu0 %227
  %v230 = vadd.f32 %v223, %v228
  %vm231 = vcmp.ge.f32.partialorder %v230, 0.0
  %v232 = vmul.f32 %v230, 0.2
  %v233 = vsel %vm231, %v230, %v232
  %234 = vrot.lane.b32.xlu0 %v233, 1
  %v235 = vpop.permute.xlu0 %234
  %v236 = vmul.f32 %v235, %v63
  %237 = vrot.lane.b32.xlu0 %v233, 127
  %v238 = vpop.permute.xlu0 %237
  %v239 = vmul.f32 %v238, %v72
  %v240 = vpack.c.bf16 %v236, %v236
  %v241 = vpack.c.bf16 %v233, %v233
  %v242 = vpack.c.bf16 %v239, %v239
  %v243 = vld [vmem:[%s4] sm:$0xf]
  %s244 = scalar_lea.vmem %s4, 4
  %v245 = vld [vmem:[%s244] sm:$0xf]
  %v247 = vsel %vm81, %v245, 0
  %v250 = vsel %vm85, %v241, 0
  %252 = vmatprep.subr.bf16.mxu0 0
  %253 = vmatpush1.bf16.msra.mxu0 %v250
  %254 = vmatprep.subr.bf16.mxu0 0
  %255 = vmatpush1.bf16.msra.mxu0 0
  %256 = vmatprep.subr.bf16.mxu0 0
  %257 = vmatpush1.bf16.msra.mxu0 0
  %258 = vmatprep.subr.bf16.mxu0 0
  %259 = vmatpush1.bf16.msra.mxu0 0
  %260 = vmatprep.subr.bf16.mxu0 0
  %261 = vmatpush1.bf16.msra.mxu0 0
  %262 = vmatprep.subr.bf16.mxu0 0
  %263 = vmatpush1.bf16.msra.mxu0 0
  %264 = vmatprep.subr.bf16.mxu0 0
  %265 = vmatpush1.bf16.msra.mxu0 0
  %266 = vmatprep.subr.bf16.mxu0 0
  %267 = vmatpush1.bf16.msra.mxu0 0
  %268 = vmatprep.subr.bf16.mxu0 0
  %269 = vmatpush1.bf16.msra.mxu0 0
  %270 = vmatprep.subr.bf16.mxu0 0
  %271 = vmatpush1.bf16.msra.mxu0 0
  %272 = vmatprep.subr.bf16.mxu0 0
  %273 = vmatpush1.bf16.msra.mxu0 0
  %274 = vmatprep.subr.bf16.mxu0 0
  %275 = vmatpush1.bf16.msra.mxu0 0
  %276 = vmatprep.subr.bf16.mxu0 0
  %277 = vmatpush1.bf16.msra.mxu0 0
  %278 = vmatprep.subr.bf16.mxu0 0
  %279 = vmatpush1.bf16.msra.mxu0 0
  %280 = vmatprep.subr.bf16.mxu0 0
  %281 = vmatpush1.bf16.msra.mxu0 0
  %282 = vmatprep.subr.bf16.mxu0 0
  %283 = vmatpush1.bf16.msra.mxu0 0
  %284 = vmatprep.mubr.bf16.mxu0 0
  %285 = vmatmul.mubr.bf16.gmra.mrb[0].mxu0 %v247
  %v286 = vpop.f32.mrb[0].mxu0
  %v287 = vadd.f32 0.0, %v286
  %v288 = vpop.f32.mrb[0].mxu0
  %v289 = vpop.f32.mrb[0].mxu0
  %v290 = vpop.f32.mrb[0].mxu0
  %291 = vdwg.mxu0
  %v293 = vsel %vm81, %v243, 0
  %v296 = vsel %vm85, %v240, 0
  %298 = vmatprep.subr.bf16.mxu0 0
  %299 = vmatpush1.bf16.msra.mxu0 %v296
  %300 = vmatprep.subr.bf16.mxu0 0
  %301 = vmatpush1.bf16.msra.mxu0 0
  %302 = vmatprep.subr.bf16.mxu0 0
  %303 = vmatpush1.bf16.msra.mxu0 0
  %304 = vmatprep.subr.bf16.mxu0 0
  %305 = vmatpush1.bf16.msra.mxu0 0
  %306 = vmatprep.subr.bf16.mxu0 0
  %307 = vmatpush1.bf16.msra.mxu0 0
  %308 = vmatprep.subr.bf16.mxu0 0
  %309 = vmatpush1.bf16.msra.mxu0 0
  %310 = vmatprep.subr.bf16.mxu0 0
  %311 = vmatpush1.bf16.msra.mxu0 0
  %312 = vmatprep.subr.bf16.mxu0 0
  %313 = vmatpush1.bf16.msra.mxu0 0
  %314 = vmatprep.subr.bf16.mxu0 0
  %315 = vmatpush1.bf16.msra.mxu0 0
  %316 = vmatprep.subr.bf16.mxu0 0
  %317 = vmatpush1.bf16.msra.mxu0 0
  %318 = vmatprep.subr.bf16.mxu0 0
  %319 = vmatpush1.bf16.msra.mxu0 0
  %320 = vmatprep.subr.bf16.mxu0 0
  %321 = vmatpush1.bf16.msra.mxu0 0
  %322 = vmatprep.subr.bf16.mxu0 0
  %323 = vmatpush1.bf16.msra.mxu0 0
  %324 = vmatprep.subr.bf16.mxu0 0
  %325 = vmatpush1.bf16.msra.mxu0 0
  %326 = vmatprep.subr.bf16.mxu0 0
  %327 = vmatpush1.bf16.msra.mxu0 0
  %328 = vmatprep.subr.bf16.mxu0 0
  %329 = vmatpush1.bf16.msra.mxu0 0
  %330 = vmatprep.mubr.bf16.mxu0 0
  %331 = vmatmul.mubr.bf16.gmra.mrb[0].mxu0 %v293
  %v332 = vpop.f32.mrb[0].mxu0
  %v333 = vadd.f32 %v287, %v332
  %v334 = vpop.f32.mrb[0].mxu0
  %v335 = vpop.f32.mrb[0].mxu0
  %v336 = vpop.f32.mrb[0].mxu0
  %337 = vdwg.mxu0
  %s338 = scalar_lea.vmem %s4, 8
  %v339 = vld [vmem:[%s338] sm:$0xf]
  %v341 = vsel %vm81, %v339, 0
  %v344 = vsel %vm85, %v242, 0
  %346 = vmatprep.subr.bf16.mxu0 0
  %347 = vmatpush1.bf16.msra.mxu0 %v344
  %348 = vmatprep.subr.bf16.mxu0 0
  %349 = vmatpush1.bf16.msra.mxu0 0
  %350 = vmatprep.subr.bf16.mxu0 0
  %351 = vmatpush1.bf16.msra.mxu0 0
  %352 = vmatprep.subr.bf16.mxu0 0
  %353 = vmatpush1.bf16.msra.mxu0 0
  %354 = vmatprep.subr.bf16.mxu0 0
  %355 = vmatpush1.bf16.msra.mxu0 0
  %356 = vmatprep.subr.bf16.mxu0 0
  %357 = vmatpush1.bf16.msra.mxu0 0
  %358 = vmatprep.subr.bf16.mxu0 0
  %359 = vmatpush1.bf16.msra.mxu0 0
  %360 = vmatprep.subr.bf16.mxu0 0
  %361 = vmatpush1.bf16.msra.mxu0 0
  %362 = vmatprep.subr.bf16.mxu0 0
  %363 = vmatpush1.bf16.msra.mxu0 0
  %364 = vmatprep.subr.bf16.mxu0 0
  %365 = vmatpush1.bf16.msra.mxu0 0
  %366 = vmatprep.subr.bf16.mxu0 0
  %367 = vmatpush1.bf16.msra.mxu0 0
  %368 = vmatprep.subr.bf16.mxu0 0
  %369 = vmatpush1.bf16.msra.mxu0 0
  %370 = vmatprep.subr.bf16.mxu0 0
  %371 = vmatpush1.bf16.msra.mxu0 0
  %372 = vmatprep.subr.bf16.mxu0 0
  %373 = vmatpush1.bf16.msra.mxu0 0
  %374 = vmatprep.subr.bf16.mxu0 0
  %375 = vmatpush1.bf16.msra.mxu0 0
  %376 = vmatprep.subr.bf16.mxu0 0
  %377 = vmatpush1.bf16.msra.mxu0 0
  %378 = vmatprep.mubr.bf16.mxu0 0
  %379 = vmatmul.mubr.bf16.gmra.mrb[0].mxu0 %v341
  %v380 = vpop.f32.mrb[0].mxu0
  %v381 = vadd.f32 0.0, %v380
  %v382 = vpop.f32.mrb[0].mxu0
  %v383 = vpop.f32.mrb[0].mxu0
  %v384 = vpop.f32.mrb[0].mxu0
  %385 = vdwg.mxu0
  %v386 = vadd.f32 %v333, %v381
  %387 = vrot.lane.b32.xlu0 %v386, 1
  %v388 = vpop.permute.xlu0 %387
  %v389 = vmul.f32 %v388, %v63
  %390 = vrot.lane.b32.xlu0 %v386, 127
  %v391 = vpop.permute.xlu0 %390
  %v392 = vmul.f32 %v391, %v72
  %v393 = vpack.c.bf16 %v389, %v389
  %v394 = vpack.c.bf16 %v386, %v386
  %v395 = vpack.c.bf16 %v392, %v392
  %v396 = vld [vmem:[%s5] sm:$0xf]
  %s397 = scalar_lea.vmem %s5, 4
  %v398 = vld [vmem:[%s397] sm:$0xf]
  %v400 = vsel %vm81, %v398, 0
  %v403 = vsel %vm85, %v394, 0
  %405 = vmatprep.subr.bf16.mxu0 0
  %406 = vmatpush1.bf16.msra.mxu0 %v403
  %407 = vmatprep.subr.bf16.mxu0 0
  %408 = vmatpush1.bf16.msra.mxu0 0
  %409 = vmatprep.subr.bf16.mxu0 0
  %410 = vmatpush1.bf16.msra.mxu0 0
  %411 = vmatprep.subr.bf16.mxu0 0
  %412 = vmatpush1.bf16.msra.mxu0 0
  %413 = vmatprep.subr.bf16.mxu0 0
  %414 = vmatpush1.bf16.msra.mxu0 0
  %415 = vmatprep.subr.bf16.mxu0 0
  %416 = vmatpush1.bf16.msra.mxu0 0
  %417 = vmatprep.subr.bf16.mxu0 0
  %418 = vmatpush1.bf16.msra.mxu0 0
  %419 = vmatprep.subr.bf16.mxu0 0
  %420 = vmatpush1.bf16.msra.mxu0 0
  %421 = vmatprep.subr.bf16.mxu0 0
  %422 = vmatpush1.bf16.msra.mxu0 0
  %423 = vmatprep.subr.bf16.mxu0 0
  %424 = vmatpush1.bf16.msra.mxu0 0
  %425 = vmatprep.subr.bf16.mxu0 0
  %426 = vmatpush1.bf16.msra.mxu0 0
  %427 = vmatprep.subr.bf16.mxu0 0
  %428 = vmatpush1.bf16.msra.mxu0 0
  %429 = vmatprep.subr.bf16.mxu0 0
  %430 = vmatpush1.bf16.msra.mxu0 0
  %431 = vmatprep.subr.bf16.mxu0 0
  %432 = vmatpush1.bf16.msra.mxu0 0
  %433 = vmatprep.subr.bf16.mxu0 0
  %434 = vmatpush1.bf16.msra.mxu0 0
  %435 = vmatprep.subr.bf16.mxu0 0
  %436 = vmatpush1.bf16.msra.mxu0 0
  %437 = vmatprep.mubr.bf16.mxu0 0
  %438 = vmatmul.mubr.bf16.gmra.mrb[0].mxu0 %v400
  %v439 = vpop.f32.mrb[0].mxu0
  %v440 = vadd.f32 0.0, %v439
  %v441 = vpop.f32.mrb[0].mxu0
  %v442 = vpop.f32.mrb[0].mxu0
  %v443 = vpop.f32.mrb[0].mxu0
  %444 = vdwg.mxu0
  %v446 = vsel %vm81, %v396, 0
  %v449 = vsel %vm85, %v393, 0
  %451 = vmatprep.subr.bf16.mxu0 0
  %452 = vmatpush1.bf16.msra.mxu0 %v449
  %453 = vmatprep.subr.bf16.mxu0 0
  %454 = vmatpush1.bf16.msra.mxu0 0
  %455 = vmatprep.subr.bf16.mxu0 0
  %456 = vmatpush1.bf16.msra.mxu0 0
  %457 = vmatprep.subr.bf16.mxu0 0
  %458 = vmatpush1.bf16.msra.mxu0 0
  %459 = vmatprep.subr.bf16.mxu0 0
  %460 = vmatpush1.bf16.msra.mxu0 0
  %461 = vmatprep.subr.bf16.mxu0 0
  %462 = vmatpush1.bf16.msra.mxu0 0
  %463 = vmatprep.subr.bf16.mxu0 0
  %464 = vmatpush1.bf16.msra.mxu0 0
  %465 = vmatprep.subr.bf16.mxu0 0
  %466 = vmatpush1.bf16.msra.mxu0 0
  %467 = vmatprep.subr.bf16.mxu0 0
  %468 = vmatpush1.bf16.msra.mxu0 0
  %469 = vmatprep.subr.bf16.mxu0 0
  %470 = vmatpush1.bf16.msra.mxu0 0
  %471 = vmatprep.subr.bf16.mxu0 0
  %472 = vmatpush1.bf16.msra.mxu0 0
  %473 = vmatprep.subr.bf16.mxu0 0
  %474 = vmatpush1.bf16.msra.mxu0 0
  %475 = vmatprep.subr.bf16.mxu0 0
  %476 = vmatpush1.bf16.msra.mxu0 0
  %477 = vmatprep.subr.bf16.mxu0 0
  %478 = vmatpush1.bf16.msra.mxu0 0
  %479 = vmatprep.subr.bf16.mxu0 0
  %480 = vmatpush1.bf16.msra.mxu0 0
  %481 = vmatprep.subr.bf16.mxu0 0
  %482 = vmatpush1.bf16.msra.mxu0 0
  %483 = vmatprep.mubr.bf16.mxu0 0
  %484 = vmatmul.mubr.bf16.gmra.mrb[0].mxu0 %v446
  %v485 = vpop.f32.mrb[0].mxu0
  %v486 = vadd.f32 %v440, %v485
  %v487 = vpop.f32.mrb[0].mxu0
  %v488 = vpop.f32.mrb[0].mxu0
  %v489 = vpop.f32.mrb[0].mxu0
  %490 = vdwg.mxu0
  %s491 = scalar_lea.vmem %s5, 8
  %v492 = vld [vmem:[%s491] sm:$0xf]
  %v494 = vsel %vm81, %v492, 0
  %v497 = vsel %vm85, %v395, 0
  %499 = vmatprep.subr.bf16.mxu0 0
  %500 = vmatpush1.bf16.msra.mxu0 %v497
  %501 = vmatprep.subr.bf16.mxu0 0
  %502 = vmatpush1.bf16.msra.mxu0 0
  %503 = vmatprep.subr.bf16.mxu0 0
  %504 = vmatpush1.bf16.msra.mxu0 0
  %505 = vmatprep.subr.bf16.mxu0 0
  %506 = vmatpush1.bf16.msra.mxu0 0
  %507 = vmatprep.subr.bf16.mxu0 0
  %508 = vmatpush1.bf16.msra.mxu0 0
  %509 = vmatprep.subr.bf16.mxu0 0
  %510 = vmatpush1.bf16.msra.mxu0 0
  %511 = vmatprep.subr.bf16.mxu0 0
  %512 = vmatpush1.bf16.msra.mxu0 0
  %513 = vmatprep.subr.bf16.mxu0 0
  %514 = vmatpush1.bf16.msra.mxu0 0
  %515 = vmatprep.subr.bf16.mxu0 0
  %516 = vmatpush1.bf16.msra.mxu0 0
  %517 = vmatprep.subr.bf16.mxu0 0
  %518 = vmatpush1.bf16.msra.mxu0 0
  %519 = vmatprep.subr.bf16.mxu0 0
  %520 = vmatpush1.bf16.msra.mxu0 0
  %521 = vmatprep.subr.bf16.mxu0 0
  %522 = vmatpush1.bf16.msra.mxu0 0
  %523 = vmatprep.subr.bf16.mxu0 0
  %524 = vmatpush1.bf16.msra.mxu0 0
  %525 = vmatprep.subr.bf16.mxu0 0
  %526 = vmatpush1.bf16.msra.mxu0 0
  %527 = vmatprep.subr.bf16.mxu0 0
  %528 = vmatpush1.bf16.msra.mxu0 0
  %529 = vmatprep.subr.bf16.mxu0 0
  %530 = vmatpush1.bf16.msra.mxu0 0
  %531 = vmatprep.mubr.bf16.mxu0 0
  %532 = vmatmul.mubr.bf16.gmra.mrb[0].mxu0 %v494
  %v533 = vpop.f32.mrb[0].mxu0
  %v534 = vadd.f32 0.0, %v533
  %v535 = vpop.f32.mrb[0].mxu0
  %v536 = vpop.f32.mrb[0].mxu0
  %v537 = vpop.f32.mrb[0].mxu0
  %538 = vdwg.mxu0
  %v539 = vadd.f32 %v486, %v534
  %v540 = vld [vmem:[%s6] sm:$0xff]
  %542 = vset.pattern.permute.xlu0 0
  %543 = vperm.xlu0 %542, %v540
  %v544 = vpop.permute.xlu0 %543
  %v546 = vadd.f32 %v539, %v544
  %v547 = vld [vmem:[%s7] sm:$0xf]
  %s548 = scalar_lea.vmem %s7, 4
  %v549 = vld [vmem:[%s548] sm:$0xf]
  %v551 = vsel %vm81, %v549, 0
  %553 = vmatprep.subr.bf16.mxu0 0
  %554 = vmatpush1.bf16.msra.mxu0 %v87
  %555 = vmatprep.subr.bf16.mxu0 0
  %556 = vmatpush1.bf16.msra.mxu0 0
  %557 = vmatprep.subr.bf16.mxu0 0
  %558 = vmatpush1.bf16.msra.mxu0 0
  %559 = vmatprep.subr.bf16.mxu0 0
  %560 = vmatpush1.bf16.msra.mxu0 0
  %561 = vmatprep.subr.bf16.mxu0 0
  %562 = vmatpush1.bf16.msra.mxu0 0
  %563 = vmatprep.subr.bf16.mxu0 0
  %564 = vmatpush1.bf16.msra.mxu0 0
  %565 = vmatprep.subr.bf16.mxu0 0
  %566 = vmatpush1.bf16.msra.mxu0 0
  %567 = vmatprep.subr.bf16.mxu0 0
  %568 = vmatpush1.bf16.msra.mxu0 0
  %569 = vmatprep.subr.bf16.mxu0 0
  %570 = vmatpush1.bf16.msra.mxu0 0
  %571 = vmatprep.subr.bf16.mxu0 0
  %572 = vmatpush1.bf16.msra.mxu0 0
  %573 = vmatprep.subr.bf16.mxu0 0
  %574 = vmatpush1.bf16.msra.mxu0 0
  %575 = vmatprep.subr.bf16.mxu0 0
  %576 = vmatpush1.bf16.msra.mxu0 0
  %577 = vmatprep.subr.bf16.mxu0 0
  %578 = vmatpush1.bf16.msra.mxu0 0
  %579 = vmatprep.subr.bf16.mxu0 0
  %580 = vmatpush1.bf16.msra.mxu0 0
  %581 = vmatprep.subr.bf16.mxu0 0
  %582 = vmatpush1.bf16.msra.mxu0 0
  %583 = vmatprep.subr.bf16.mxu0 0
  %584 = vmatpush1.bf16.msra.mxu0 0
  %585 = vmatprep.mubr.bf16.mxu0 0
  %586 = vmatmul.mubr.bf16.gmra.mrb[0].mxu0 %v551
  %v587 = vpop.f32.mrb[0].mxu0
  %v588 = vadd.f32 0.0, %v587
  %v589 = vpop.f32.mrb[0].mxu0
  %v590 = vpop.f32.mrb[0].mxu0
  %v591 = vpop.f32.mrb[0].mxu0
  %592 = vdwg.mxu0
  %v594 = vsel %vm81, %v547, 0
  %596 = vmatprep.subr.bf16.mxu0 0
  %597 = vmatpush1.bf16.msra.mxu0 %v133
  %598 = vmatprep.subr.bf16.mxu0 0
  %599 = vmatpush1.bf16.msra.mxu0 0
  %600 = vmatprep.subr.bf16.mxu0 0
  %601 = vmatpush1.bf16.msra.mxu0 0
  %602 = vmatprep.subr.bf16.mxu0 0
  %603 = vmatpush1.bf16.msra.mxu0 0
  %604 = vmatprep.subr.bf16.mxu0 0
  %605 = vmatpush1.bf16.msra.mxu0 0
  %606 = vmatprep.subr.bf16.mxu0 0
  %607 = vmatpush1.bf16.msra.mxu0 0
  %608 = vmatprep.subr.bf16.mxu0 0
  %609 = vmatpush1.bf16.msra.mxu0 0
  %610 = vmatprep.subr.bf16.mxu0 0
  %611 = vmatpush1.bf16.msra.mxu0 0
  %612 = vmatprep.subr.bf16.mxu0 0
  %613 = vmatpush1.bf16.msra.mxu0 0
  %614 = vmatprep.subr.bf16.mxu0 0
  %615 = vmatpush1.bf16.msra.mxu0 0
  %616 = vmatprep.subr.bf16.mxu0 0
  %617 = vmatpush1.bf16.msra.mxu0 0
  %618 = vmatprep.subr.bf16.mxu0 0
  %619 = vmatpush1.bf16.msra.mxu0 0
  %620 = vmatprep.subr.bf16.mxu0 0
  %621 = vmatpush1.bf16.msra.mxu0 0
  %622 = vmatprep.subr.bf16.mxu0 0
  %623 = vmatpush1.bf16.msra.mxu0 0
  %624 = vmatprep.subr.bf16.mxu0 0
  %625 = vmatpush1.bf16.msra.mxu0 0
  %626 = vmatprep.subr.bf16.mxu0 0
  %627 = vmatpush1.bf16.msra.mxu0 0
  %628 = vmatprep.mubr.bf16.mxu0 0
  %629 = vmatmul.mubr.bf16.gmra.mrb[0].mxu0 %v594
  %v630 = vpop.f32.mrb[0].mxu0
  %v631 = vadd.f32 %v588, %v630
  %v632 = vpop.f32.mrb[0].mxu0
  %v633 = vpop.f32.mrb[0].mxu0
  %v634 = vpop.f32.mrb[0].mxu0
  %635 = vdwg.mxu0
  %s636 = scalar_lea.vmem %s7, 8
  %v637 = vld [vmem:[%s636] sm:$0xf]
  %v639 = vsel %vm81, %v637, 0
  %641 = vmatprep.subr.bf16.mxu0 0
  %642 = vmatpush1.bf16.msra.mxu0 %v181
  %643 = vmatprep.subr.bf16.mxu0 0
  %644 = vmatpush1.bf16.msra.mxu0 0
  %645 = vmatprep.subr.bf16.mxu0 0
  %646 = vmatpush1.bf16.msra.mxu0 0
  %647 = vmatprep.subr.bf16.mxu0 0
  %648 = vmatpush1.bf16.msra.mxu0 0
  %649 = vmatprep.subr.bf16.mxu0 0
  %650 = vmatpush1.bf16.msra.mxu0 0
  %651 = vmatprep.subr.bf16.mxu0 0
  %652 = vmatpush1.bf16.msra.mxu0 0
  %653 = vmatprep.subr.bf16.mxu0 0
  %654 = vmatpush1.bf16.msra.mxu0 0
  %655 = vmatprep.subr.bf16.mxu0 0
  %656 = vmatpush1.bf16.msra.mxu0 0
  %657 = vmatprep.subr.bf16.mxu0 0
  %658 = vmatpush1.bf16.msra.mxu0 0
  %659 = vmatprep.subr.bf16.mxu0 0
  %660 = vmatpush1.bf16.msra.mxu0 0
  %661 = vmatprep.subr.bf16.mxu0 0
  %662 = vmatpush1.bf16.msra.mxu0 0
  %663 = vmatprep.subr.bf16.mxu0 0
  %664 = vmatpush1.bf16.msra.mxu0 0
  %665 = vmatprep.subr.bf16.mxu0 0
  %666 = vmatpush1.bf16.msra.mxu0 0
  %667 = vmatprep.subr.bf16.mxu0 0
  %668 = vmatpush1.bf16.msra.mxu0 0
  %669 = vmatprep.subr.bf16.mxu0 0
  %670 = vmatpush1.bf16.msra.mxu0 0
  %671 = vmatprep.subr.bf16.mxu0 0
  %672 = vmatpush1.bf16.msra.mxu0 0
  %673 = vmatprep.mubr.bf16.mxu0 0
  %674 = vmatmul.mubr.bf16.gmra.mrb[0].mxu0 %v639
  %v675 = vpop.f32.mrb[0].mxu0
  %v676 = vadd.f32 0.0, %v675
  %v677 = vpop.f32.mrb[0].mxu0
  %v678 = vpop.f32.mrb[0].mxu0
  %v679 = vpop.f32.mrb[0].mxu0
  %680 = vdwg.mxu0
  %v681 = vadd.f32 %v631, %v676
  %v682 = vadd.f32 %v546, %v681
  %vm683 = vcmp.ge.f32.partialorder %v682, 0.0
  %v684 = vmul.f32 %v682, 0.2
  %v685 = vsel %vm683, %v682, %v684
  %v686 = vld [vmem:[%s15] sm:$0x1]
  %687 = vrot.lane.b32.xlu0 %v685, 2
  %v688 = vpop.permute.xlu0 %687
  %v689 = vmul.f32 %v688, %v63
  %690 = vrot.lane.b32.xlu0 %v685, 126
  %v691 = vpop.permute.xlu0 %690
  %v693 = vlaneseq
  %v694 = vshrl.u32 %v693, 7
  %v695 = vsub.s32 0, %v694
  %v696 = vrot.slane %v686, %v695
  %v698 = vmul.f32 %v691, %v696
  %v699 = vpack.c.bf16 %v689, %v689
  %v700 = vpack.c.bf16 %v685, %v685
  %v701 = vpack.c.bf16 %v698, %v698
  %v702 = vld [vmem:[%s9] sm:$0xf]
  %v703 = vld [vmem:[%s9 + $0x4] sm:$0xf]
  %s704 = scalar_lea.vmem %s9, 8
  %v705 = vld [vmem:[%s704] sm:$0xf]
  %v706 = vld [vmem:[%s704 + $0x4] sm:$0xf]
  %v709 = vunpack.c.l.b16 %v705
  %v710 = vunpack.c.l.b16 %v706
  %v711 = vpack.c.b16 %v710, %v709
  %v713 = vsel %vm81, %v711, 0
  %v716 = vsel %vm85, %v700, 0
  %718 = vmatprep.subr.bf16.mxu0 0
  %719 = vmatpush1.bf16.msra.mxu0 %v716
  %720 = vmatprep.subr.bf16.mxu0 0
  %721 = vmatpush1.bf16.msra.mxu0 0
  %722 = vmatprep.subr.bf16.mxu0 0
  %723 = vmatpush1.bf16.msra.mxu0 0
  %724 = vmatprep.subr.bf16.mxu0 0
  %725 = vmatpush1.bf16.msra.mxu0 0
  %726 = vmatprep.subr.bf16.mxu0 0
  %727 = vmatpush1.bf16.msra.mxu0 0
  %728 = vmatprep.subr.bf16.mxu0 0
  %729 = vmatpush1.bf16.msra.mxu0 0
  %730 = vmatprep.subr.bf16.mxu0 0
  %731 = vmatpush1.bf16.msra.mxu0 0
  %732 = vmatprep.subr.bf16.mxu0 0
  %733 = vmatpush1.bf16.msra.mxu0 0
  %734 = vmatprep.subr.bf16.mxu0 0
  %735 = vmatpush1.bf16.msra.mxu0 0
  %736 = vmatprep.subr.bf16.mxu0 0
  %737 = vmatpush1.bf16.msra.mxu0 0
  %738 = vmatprep.subr.bf16.mxu0 0
  %739 = vmatpush1.bf16.msra.mxu0 0
  %740 = vmatprep.subr.bf16.mxu0 0
  %741 = vmatpush1.bf16.msra.mxu0 0
  %742 = vmatprep.subr.bf16.mxu0 0
  %743 = vmatpush1.bf16.msra.mxu0 0
  %744 = vmatprep.subr.bf16.mxu0 0
  %745 = vmatpush1.bf16.msra.mxu0 0
  %746 = vmatprep.subr.bf16.mxu0 0
  %747 = vmatpush1.bf16.msra.mxu0 0
  %748 = vmatprep.subr.bf16.mxu0 0
  %749 = vmatpush1.bf16.msra.mxu0 0
  %750 = vmatprep.mubr.bf16.mxu0 0
  %751 = vmatmul.mubr.bf16.gmra.mrb[0].mxu0 %v713
  %v752 = vpop.f32.mrb[0].mxu0
  %v753 = vadd.f32 0.0, %v752
  %v754 = vpop.f32.mrb[0].mxu0
  %v755 = vpop.f32.mrb[0].mxu0
  %v756 = vadd.f32 0.0, %v755
  %v757 = vpop.f32.mrb[0].mxu0
  %758 = vdwg.mxu0
  %v761 = vunpack.c.l.b16 %v702
  %v762 = vunpack.c.l.b16 %v703
  %v763 = vpack.c.b16 %v762, %v761
  %v765 = vsel %vm81, %v763, 0
  %v768 = vsel %vm85, %v699, 0
  %770 = vmatprep.subr.bf16.mxu0 0
  %771 = vmatpush1.bf16.msra.mxu0 %v768
  %772 = vmatprep.subr.bf16.mxu0 0
  %773 = vmatpush1.bf16.msra.mxu0 0
  %774 = vmatprep.subr.bf16.mxu0 0
  %775 = vmatpush1.bf16.msra.mxu0 0
  %776 = vmatprep.subr.bf16.mxu0 0
  %777 = vmatpush1.bf16.msra.mxu0 0
  %778 = vmatprep.subr.bf16.mxu0 0
  %779 = vmatpush1.bf16.msra.mxu0 0
  %780 = vmatprep.subr.bf16.mxu0 0
  %781 = vmatpush1.bf16.msra.mxu0 0
  %782 = vmatprep.subr.bf16.mxu0 0
  %783 = vmatpush1.bf16.msra.mxu0 0
  %784 = vmatprep.subr.bf16.mxu0 0
  %785 = vmatpush1.bf16.msra.mxu0 0
  %786 = vmatprep.subr.bf16.mxu0 0
  %787 = vmatpush1.bf16.msra.mxu0 0
  %788 = vmatprep.subr.bf16.mxu0 0
  %789 = vmatpush1.bf16.msra.mxu0 0
  %790 = vmatprep.subr.bf16.mxu0 0
  %791 = vmatpush1.bf16.msra.mxu0 0
  %792 = vmatprep.subr.bf16.mxu0 0
  %793 = vmatpush1.bf16.msra.mxu0 0
  %794 = vmatprep.subr.bf16.mxu0 0
  %795 = vmatpush1.bf16.msra.mxu0 0
  %796 = vmatprep.subr.bf16.mxu0 0
  %797 = vmatpush1.bf16.msra.mxu0 0
  %798 = vmatprep.subr.bf16.mxu0 0
  %799 = vmatpush1.bf16.msra.mxu0 0
  %800 = vmatprep.subr.bf16.mxu0 0
  %801 = vmatpush1.bf16.msra.mxu0 0
  %802 = vmatprep.mubr.bf16.mxu0 0
  %803 = vmatmul.mubr.bf16.gmra.mrb[0].mxu0 %v765
  %v804 = vpop.f32.mrb[0].mxu0
  %v805 = vadd.f32 %v753, %v804
  %v806 = vpop.f32.mrb[0].mxu0
  %v807 = vpop.f32.mrb[0].mxu0
  %v808 = vadd.f32 %v756, %v807
  %v809 = vpop.f32.mrb[0].mxu0
  %810 = vdwg.mxu0
  %s811 = scalar_lea.vmem %s9, 16
  %v812 = vld [vmem:[%s811] sm:$0xf]
  %v813 = vld [vmem:[%s811 + $0x4] sm:$0xf]
  %v816 = vunpack.c.l.b16 %v812
  %v817 = vunpack.c.l.b16 %v813
  %v818 = vpack.c.b16 %v817, %v816
  %v820 = vsel %vm81, %v818, 0
  %v823 = vsel %vm85, %v701, 0
  %825 = vmatprep.subr.bf16.mxu0 0
  %826 = vmatpush1.bf16.msra.mxu0 %v823
  %827 = vmatprep.subr.bf16.mxu0 0
  %828 = vmatpush1.bf16.msra.mxu0 0
  %829 = vmatprep.subr.bf16.mxu0 0
  %830 = vmatpush1.bf16.msra.mxu0 0
  %831 = vmatprep.subr.bf16.mxu0 0
  %832 = vmatpush1.bf16.msra.mxu0 0
  %833 = vmatprep.subr.bf16.mxu0 0
  %834 = vmatpush1.bf16.msra.mxu0 0
  %835 = vmatprep.subr.bf16.mxu0 0
  %836 = vmatpush1.bf16.msra.mxu0 0
  %837 = vmatprep.subr.bf16.mxu0 0
  %838 = vmatpush1.bf16.msra.mxu0 0
  %839 = vmatprep.subr.bf16.mxu0 0
  %840 = vmatpush1.bf16.msra.mxu0 0
  %841 = vmatprep.subr.bf16.mxu0 0
  %842 = vmatpush1.bf16.msra.mxu0 0
  %843 = vmatprep.subr.bf16.mxu0 0
  %844 = vmatpush1.bf16.msra.mxu0 0
  %845 = vmatprep.subr.bf16.mxu0 0
  %846 = vmatpush1.bf16.msra.mxu0 0
  %847 = vmatprep.subr.bf16.mxu0 0
  %848 = vmatpush1.bf16.msra.mxu0 0
  %849 = vmatprep.subr.bf16.mxu0 0
  %850 = vmatpush1.bf16.msra.mxu0 0
  %851 = vmatprep.subr.bf16.mxu0 0
  %852 = vmatpush1.bf16.msra.mxu0 0
  %853 = vmatprep.subr.bf16.mxu0 0
  %854 = vmatpush1.bf16.msra.mxu0 0
  %855 = vmatprep.subr.bf16.mxu0 0
  %856 = vmatpush1.bf16.msra.mxu0 0
  %857 = vmatprep.mubr.bf16.mxu0 0
  %858 = vmatmul.mubr.bf16.gmra.mrb[0].mxu0 %v820
  %v859 = vpop.f32.mrb[0].mxu0
  %v860 = vadd.f32 0.0, %v859
  %v861 = vpop.f32.mrb[0].mxu0
  %v862 = vpop.f32.mrb[0].mxu0
  %v863 = vadd.f32 0.0, %v862
  %v864 = vpop.f32.mrb[0].mxu0
  %865 = vdwg.mxu0
  %v866 = vadd.f32 %v805, %v860
  %v867 = vadd.f32 %v808, %v863
  %v868 = vld [vmem:[%s10] sm:$0xff]
  %v869 = vld [vmem:[%s10 + $0x8] sm:$0xff]
  %871 = vset.pattern.permute.xlu0 0
  %872 = vperm.xlu0 %871, %v868
  %v873 = vpop.permute.xlu0 %872
  %876 = vset.pattern.permute.xlu0 0
  %877 = vperm.xlu0 %876, %v869
  %v878 = vpop.permute.xlu0 %877
  %v880 = vadd.f32 %v866, %v873
  %v881 = vadd.f32 %v867, %v878
  %vm882 = vcmp.ge.f32.partialorder %v880, 0.0
  %vm883 = vcmp.ge.f32.partialorder %v881, 0.0
  %v884 = vmul.f32 %v880, 0.2
  %v885 = vmul.f32 %v881, 0.2
  %v886 = vsel %vm882, %v880, %v884
  %v887 = vsel %vm883, %v881, %v885
  %888 = vrot.lane.b32.xlu0 %v886, 2
  %v889 = vpop.permute.xlu0 %888
  %890 = vrot.lane.b32.xlu0 %v887, 2
  %v891 = vpop.permute.xlu0 %890
  %v892 = vmul.f32 %v889, %v63
  %v893 = vmul.f32 %v891, %v63
  %894 = vrot.lane.b32.xlu0 %v886, 126
  %v895 = vpop.permute.xlu0 %894
  %896 = vrot.lane.b32.xlu0 %v887, 126
  %v897 = vpop.permute.xlu0 %896
  %v898 = vmul.f32 %v895, %v696
  %v899 = vmul.f32 %v897, %v696
  %v900 = vpack.c.bf16 %v893, %v892
  %v901 = vpack.c.bf16 %v887, %v886
  %v902 = vpack.c.bf16 %v899, %v898
  %v903 = vld [vmem:[%s11] sm:$0xf]
  %v904 = vld [vmem:[%s11 + $0x4] sm:$0xf]
  %s905 = scalar_lea.vmem %s11, 8
  %v906 = vld [vmem:[%s905] sm:$0xf]
  %v907 = vld [vmem:[%s905 + $0x4] sm:$0xf]
  %v910 = vunpack.c.l.b16 %v906
  %v911 = vunpack.c.l.b16 %v907
  %v912 = vpack.c.b16 %v911, %v910
  %vm913 = vcmask 130048
  %v915 = vsel %vm913, %v912, 0
  %917 = vmatprep.subr.bf16.mxu0 0
  %918 = vmatpush1.bf16.msra.mxu0 %v901
  %919 = vmatprep.subr.bf16.mxu0 0
  %920 = vmatpush1.bf16.msra.mxu0 0
  %921 = vmatprep.subr.bf16.mxu0 0
  %922 = vmatpush1.bf16.msra.mxu0 0
  %923 = vmatprep.subr.bf16.mxu0 0
  %924 = vmatpush1.bf16.msra.mxu0 0
  %925 = vmatprep.subr.bf16.mxu0 0
  %926 = vmatpush1.bf16.msra.mxu0 0
  %927 = vmatprep.subr.bf16.mxu0 0
  %928 = vmatpush1.bf16.msra.mxu0 0
  %929 = vmatprep.subr.bf16.mxu0 0
  %930 = vmatpush1.bf16.msra.mxu0 0
  %931 = vmatprep.subr.bf16.mxu0 0
  %932 = vmatpush1.bf16.msra.mxu0 0
  %933 = vmatprep.subr.bf16.mxu0 0
  %934 = vmatpush1.bf16.msra.mxu0 0
  %935 = vmatprep.subr.bf16.mxu0 0
  %936 = vmatpush1.bf16.msra.mxu0 0
  %937 = vmatprep.subr.bf16.mxu0 0
  %938 = vmatpush1.bf16.msra.mxu0 0
  %939 = vmatprep.subr.bf16.mxu0 0
  %940 = vmatpush1.bf16.msra.mxu0 0
  %941 = vmatprep.subr.bf16.mxu0 0
  %942 = vmatpush1.bf16.msra.mxu0 0
  %943 = vmatprep.subr.bf16.mxu0 0
  %944 = vmatpush1.bf16.msra.mxu0 0
  %945 = vmatprep.subr.bf16.mxu0 0
  %946 = vmatpush1.bf16.msra.mxu0 0
  %947 = vmatprep.subr.bf16.mxu0 0
  %948 = vmatpush1.bf16.msra.mxu0 0
  %949 = vmatprep.mubr.bf16.mxu0 0
  %950 = vmatmul.mubr.bf16.gmra.mrb[0].mxu0 %v915
  %v951 = vpop.f32.mrb[0].mxu0
  %v952 = vadd.f32 0.0, %v951
  %v953 = vpop.f32.mrb[0].mxu0
  %v954 = vpop.f32.mrb[0].mxu0
  %v955 = vadd.f32 0.0, %v954
  %v956 = vpop.f32.mrb[0].mxu0
  %957 = vdwg.mxu0
  %v960 = vunpack.c.l.b16 %v903
  %v961 = vunpack.c.l.b16 %v904
  %v962 = vpack.c.b16 %v961, %v960
  %v964 = vsel %vm913, %v962, 0
  %966 = vmatprep.subr.bf16.mxu0 0
  %967 = vmatpush1.bf16.msra.mxu0 %v900
  %968 = vmatprep.subr.bf16.mxu0 0
  %969 = vmatpush1.bf16.msra.mxu0 0
  %970 = vmatprep.subr.bf16.mxu0 0
  %971 = vmatpush1.bf16.msra.mxu0 0
  %972 = vmatprep.subr.bf16.mxu0 0
  %973 = vmatpush1.bf16.msra.mxu0 0
  %974 = vmatprep.subr.bf16.mxu0 0
  %975 = vmatpush1.bf16.msra.mxu0 0
  %976 = vmatprep.subr.bf16.mxu0 0
  %977 = vmatpush1.bf16.msra.mxu0 0
  %978 = vmatprep.subr.bf16.mxu0 0
  %979 = vmatpush1.bf16.msra.mxu0 0
  %980 = vmatprep.subr.bf16.mxu0 0
  %981 = vmatpush1.bf16.msra.mxu0 0
  %982 = vmatprep.subr.bf16.mxu0 0
  %983 = vmatpush1.bf16.msra.mxu0 0
  %984 = vmatprep.subr.bf16.mxu0 0
  %985 = vmatpush1.bf16.msra.mxu0 0
  %986 = vmatprep.subr.bf16.mxu0 0
  %987 = vmatpush1.bf16.msra.mxu0 0
  %988 = vmatprep.subr.bf16.mxu0 0
  %989 = vmatpush1.bf16.msra.mxu0 0
  %990 = vmatprep.subr.bf16.mxu0 0
  %991 = vmatpush1.bf16.msra.mxu0 0
  %992 = vmatprep.subr.bf16.mxu0 0
  %993 = vmatpush1.bf16.msra.mxu0 0
  %994 = vmatprep.subr.bf16.mxu0 0
  %995 = vmatpush1.bf16.msra.mxu0 0
  %996 = vmatprep.subr.bf16.mxu0 0
  %997 = vmatpush1.bf16.msra.mxu0 0
  %998 = vmatprep.mubr.bf16.mxu0 0
  %999 = vmatmul.mubr.bf16.gmra.mrb[0].mxu0 %v964
  %v1000 = vpop.f32.mrb[0].mxu0
  %v1001 = vadd.f32 %v952, %v1000
  %v1002 = vpop.f32.mrb[0].mxu0
  %v1003 = vpop.f32.mrb[0].mxu0
  %v1004 = vadd.f32 %v955, %v1003
  %v1005 = vpop.f32.mrb[0].mxu0
  %1006 = vdwg.mxu0
  %s1007 = scalar_lea.vmem %s11, 16
  %v1008 = vld [vmem:[%s1007] sm:$0xf]
  %v1009 = vld [vmem:[%s1007 + $0x4] sm:$0xf]
  %v1012 = vunpack.c.l.b16 %v1008
  %v1013 = vunpack.c.l.b16 %v1009
  %v1014 = vpack.c.b16 %v1013, %v1012
  %v1016 = vsel %vm913, %v1014, 0
  %1018 = vmatprep.subr.bf16.mxu0 0
  %1019 = vmatpush1.bf16.msra.mxu0 %v902
  %1020 = vmatprep.subr.bf16.mxu0 0
  %1021 = vmatpush1.bf16.msra.mxu0 0
  %1022 = vmatprep.subr.bf16.mxu0 0
  %1023 = vmatpush1.bf16.msra.mxu0 0
  %1024 = vmatprep.subr.bf16.mxu0 0
  %1025 = vmatpush1.bf16.msra.mxu0 0
  %1026 = vmatprep.subr.bf16.mxu0 0
  %1027 = vmatpush1.bf16.msra.mxu0 0
  %1028 = vmatprep.subr.bf16.mxu0 0
  %1029 = vmatpush1.bf16.msra.mxu0 0
  %1030 = vmatprep.subr.bf16.mxu0 0
  %1031 = vmatpush1.bf16.msra.mxu0 0
  %1032 = vmatprep.subr.bf16.mxu0 0
  %1033 = vmatpush1.bf16.msra.mxu0 0
  %1034 = vmatprep.subr.bf16.mxu0 0
  %1035 = vmatpush1.bf16.msra.mxu0 0
  %1036 = vmatprep.subr.bf16.mxu0 0
  %1037 = vmatpush1.bf16.msra.mxu0 0
  %1038 = vmatprep.subr.bf16.mxu0 0
  %1039 = vmatpush1.bf16.msra.mxu0 0
  %1040 = vmatprep.subr.bf16.mxu0 0
  %1041 = vmatpush1.bf16.msra.mxu0 0
  %1042 = vmatprep.subr.bf16.mxu0 0
  %1043 = vmatpush1.bf16.msra.mxu0 0
  %1044 = vmatprep.subr.bf16.mxu0 0
  %1045 = vmatpush1.bf16.msra.mxu0 0
  %1046 = vmatprep.subr.bf16.mxu0 0
  %1047 = vmatpush1.bf16.msra.mxu0 0
  %1048 = vmatprep.subr.bf16.mxu0 0
  %1049 = vmatpush1.bf16.msra.mxu0 0
  %1050 = vmatprep.mubr.bf16.mxu0 0
  %1051 = vmatmul.mubr.bf16.gmra.mrb[0].mxu0 %v1016
  %v1052 = vpop.f32.mrb[0].mxu0
  %v1053 = vadd.f32 0.0, %v1052
  %v1054 = vpop.f32.mrb[0].mxu0
  %v1055 = vpop.f32.mrb[0].mxu0
  %v1056 = vadd.f32 0.0, %v1055
  %v1057 = vpop.f32.mrb[0].mxu0
  %1058 = vdwg.mxu0
  %v1059 = vadd.f32 %v1001, %v1053
  %v1060 = vadd.f32 %v1004, %v1056
  %1061 = vrot.lane.b32.xlu0 %v1059, 2
  %v1062 = vpop.permute.xlu0 %1061
  %1063 = vrot.lane.b32.xlu0 %v1060, 2
  %v1064 = vpop.permute.xlu0 %1063
  %v1065 = vmul.f32 %v1062, %v63
  %v1066 = vmul.f32 %v1064, %v63
  %1067 = vrot.lane.b32.xlu0 %v1059, 126
  %v1068 = vpop.permute.xlu0 %1067
  %1069 = vrot.lane.b32.xlu0 %v1060, 126
  %v1070 = vpop.permute.xlu0 %1069
  %v1071 = vmul.f32 %v1068, %v696
  %v1072 = vmul.f32 %v1070, %v696
  %v1073 = vpack.c.bf16 %v1066, %v1065
  %v1074 = vpack.c.bf16 %v1060, %v1059
  %v1075 = vpack.c.bf16 %v1072, %v1071
  %v1076 = vld [vmem:[%s12] sm:$0xf]
  %v1077 = vld [vmem:[%s12 + $0x4] sm:$0xf]
  %s1078 = scalar_lea.vmem %s12, 8
  %v1079 = vld [vmem:[%s1078] sm:$0xf]
  %v1080 = vld [vmem:[%s1078 + $0x4] sm:$0xf]
  %v1083 = vunpack.c.l.b16 %v1079
  %v1084 = vunpack.c.l.b16 %v1080
  %v1085 = vpack.c.b16 %v1084, %v1083
  %v1087 = vsel %vm913, %v1085, 0
  %1089 = vmatprep.subr.bf16.mxu0 0
  %1090 = vmatpush1.bf16.msra.mxu0 %v1074
  %1091 = vmatprep.subr.bf16.mxu0 0
  %1092 = vmatpush1.bf16.msra.mxu0 0
  %1093 = vmatprep.subr.bf16.mxu0 0
  %1094 = vmatpush1.bf16.msra.mxu0 0
  %1095 = vmatprep.subr.bf16.mxu0 0
  %1096 = vmatpush1.bf16.msra.mxu0 0
  %1097 = vmatprep.subr.bf16.mxu0 0
  %1098 = vmatpush1.bf16.msra.mxu0 0
  %1099 = vmatprep.subr.bf16.mxu0 0
  %1100 = vmatpush1.bf16.msra.mxu0 0
  %1101 = vmatprep.subr.bf16.mxu0 0
  %1102 = vmatpush1.bf16.msra.mxu0 0
  %1103 = vmatprep.subr.bf16.mxu0 0
  %1104 = vmatpush1.bf16.msra.mxu0 0
  %1105 = vmatprep.subr.bf16.mxu0 0
  %1106 = vmatpush1.bf16.msra.mxu0 0
  %1107 = vmatprep.subr.bf16.mxu0 0
  %1108 = vmatpush1.bf16.msra.mxu0 0
  %1109 = vmatprep.subr.bf16.mxu0 0
  %1110 = vmatpush1.bf16.msra.mxu0 0
  %1111 = vmatprep.subr.bf16.mxu0 0
  %1112 = vmatpush1.bf16.msra.mxu0 0
  %1113 = vmatprep.subr.bf16.mxu0 0
  %1114 = vmatpush1.bf16.msra.mxu0 0
  %1115 = vmatprep.subr.bf16.mxu0 0
  %1116 = vmatpush1.bf16.msra.mxu0 0
  %1117 = vmatprep.subr.bf16.mxu0 0
  %1118 = vmatpush1.bf16.msra.mxu0 0
  %1119 = vmatprep.subr.bf16.mxu0 0
  %1120 = vmatpush1.bf16.msra.mxu0 0
  %1121 = vmatprep.mubr.bf16.mxu0 0
  %1122 = vmatmul.mubr.bf16.gmra.mrb[0].mxu0 %v1087
  %v1123 = vpop.f32.mrb[0].mxu0
  %v1124 = vadd.f32 0.0, %v1123
  %v1125 = vpop.f32.mrb[0].mxu0
  %v1126 = vpop.f32.mrb[0].mxu0
  %v1127 = vadd.f32 0.0, %v1126
  %v1128 = vpop.f32.mrb[0].mxu0
  %1129 = vdwg.mxu0
  %v1132 = vunpack.c.l.b16 %v1076
  %v1133 = vunpack.c.l.b16 %v1077
  %v1134 = vpack.c.b16 %v1133, %v1132
  %v1136 = vsel %vm913, %v1134, 0
  %1138 = vmatprep.subr.bf16.mxu0 0
  %1139 = vmatpush1.bf16.msra.mxu0 %v1073
  %1140 = vmatprep.subr.bf16.mxu0 0
  %1141 = vmatpush1.bf16.msra.mxu0 0
  %1142 = vmatprep.subr.bf16.mxu0 0
  %1143 = vmatpush1.bf16.msra.mxu0 0
  %1144 = vmatprep.subr.bf16.mxu0 0
  %1145 = vmatpush1.bf16.msra.mxu0 0
  %1146 = vmatprep.subr.bf16.mxu0 0
  %1147 = vmatpush1.bf16.msra.mxu0 0
  %1148 = vmatprep.subr.bf16.mxu0 0
  %1149 = vmatpush1.bf16.msra.mxu0 0
  %1150 = vmatprep.subr.bf16.mxu0 0
  %1151 = vmatpush1.bf16.msra.mxu0 0
  %1152 = vmatprep.subr.bf16.mxu0 0
  %1153 = vmatpush1.bf16.msra.mxu0 0
  %1154 = vmatprep.subr.bf16.mxu0 0
  %1155 = vmatpush1.bf16.msra.mxu0 0
  %1156 = vmatprep.subr.bf16.mxu0 0
  %1157 = vmatpush1.bf16.msra.mxu0 0
  %1158 = vmatprep.subr.bf16.mxu0 0
  %1159 = vmatpush1.bf16.msra.mxu0 0
  %1160 = vmatprep.subr.bf16.mxu0 0
  %1161 = vmatpush1.bf16.msra.mxu0 0
  %1162 = vmatprep.subr.bf16.mxu0 0
  %1163 = vmatpush1.bf16.msra.mxu0 0
  %1164 = vmatprep.subr.bf16.mxu0 0
  %1165 = vmatpush1.bf16.msra.mxu0 0
  %1166 = vmatprep.subr.bf16.mxu0 0
  %1167 = vmatpush1.bf16.msra.mxu0 0
  %1168 = vmatprep.subr.bf16.mxu0 0
  %1169 = vmatpush1.bf16.msra.mxu0 0
  %1170 = vmatprep.mubr.bf16.mxu0 0
  %1171 = vmatmul.mubr.bf16.gmra.mrb[0].mxu0 %v1136
  %v1172 = vpop.f32.mrb[0].mxu0
  %v1173 = vadd.f32 %v1124, %v1172
  %v1174 = vpop.f32.mrb[0].mxu0
  %v1175 = vpop.f32.mrb[0].mxu0
  %v1176 = vadd.f32 %v1127, %v1175
  %v1177 = vpop.f32.mrb[0].mxu0
  %1178 = vdwg.mxu0
  %s1179 = scalar_lea.vmem %s12, 16
  %v1180 = vld [vmem:[%s1179] sm:$0xf]
  %v1181 = vld [vmem:[%s1179 + $0x4] sm:$0xf]
  %v1184 = vunpack.c.l.b16 %v1180
  %v1185 = vunpack.c.l.b16 %v1181
  %v1186 = vpack.c.b16 %v1185, %v1184
  %v1188 = vsel %vm913, %v1186, 0
  %1190 = vmatprep.subr.bf16.mxu0 0
  %1191 = vmatpush1.bf16.msra.mxu0 %v1075
  %1192 = vmatprep.subr.bf16.mxu0 0
  %1193 = vmatpush1.bf16.msra.mxu0 0
  %1194 = vmatprep.subr.bf16.mxu0 0
  %1195 = vmatpush1.bf16.msra.mxu0 0
  %1196 = vmatprep.subr.bf16.mxu0 0
  %1197 = vmatpush1.bf16.msra.mxu0 0
  %1198 = vmatprep.subr.bf16.mxu0 0
  %1199 = vmatpush1.bf16.msra.mxu0 0
  %1200 = vmatprep.subr.bf16.mxu0 0
  %1201 = vmatpush1.bf16.msra.mxu0 0
  %1202 = vmatprep.subr.bf16.mxu0 0
  %1203 = vmatpush1.bf16.msra.mxu0 0
  %1204 = vmatprep.subr.bf16.mxu0 0
  %1205 = vmatpush1.bf16.msra.mxu0 0
  %1206 = vmatprep.subr.bf16.mxu0 0
  %1207 = vmatpush1.bf16.msra.mxu0 0
  %1208 = vmatprep.subr.bf16.mxu0 0
  %1209 = vmatpush1.bf16.msra.mxu0 0
  %1210 = vmatprep.subr.bf16.mxu0 0
  %1211 = vmatpush1.bf16.msra.mxu0 0
  %1212 = vmatprep.subr.bf16.mxu0 0
  %1213 = vmatpush1.bf16.msra.mxu0 0
  %1214 = vmatprep.subr.bf16.mxu0 0
  %1215 = vmatpush1.bf16.msra.mxu0 0
  %1216 = vmatprep.subr.bf16.mxu0 0
  %1217 = vmatpush1.bf16.msra.mxu0 0
  %1218 = vmatprep.subr.bf16.mxu0 0
  %1219 = vmatpush1.bf16.msra.mxu0 0
  %1220 = vmatprep.subr.bf16.mxu0 0
  %1221 = vmatpush1.bf16.msra.mxu0 0
  %1222 = vmatprep.mubr.bf16.mxu0 0
  %1223 = vmatmul.mubr.bf16.gmra.mrb[0].mxu0 %v1188
  %v1224 = vpop.f32.mrb[0].mxu0
  %v1225 = vadd.f32 0.0, %v1224
  %v1226 = vpop.f32.mrb[0].mxu0
  %v1227 = vpop.f32.mrb[0].mxu0
  %v1228 = vadd.f32 0.0, %v1227
  %v1229 = vpop.f32.mrb[0].mxu0
  %1230 = vdwg.mxu0
  %v1231 = vadd.f32 %v1173, %v1225
  %v1232 = vadd.f32 %v1176, %v1228
  %v1233 = vld [vmem:[%s13] sm:$0xff]
  %v1234 = vld [vmem:[%s13 + $0x8] sm:$0xff]
  %1236 = vset.pattern.permute.xlu0 0
  %1237 = vperm.xlu0 %1236, %v1233
  %v1238 = vpop.permute.xlu0 %1237
  %1241 = vset.pattern.permute.xlu0 0
  %1242 = vperm.xlu0 %1241, %v1234
  %v1243 = vpop.permute.xlu0 %1242
  %v1245 = vadd.f32 %v1231, %v1238
  %v1246 = vadd.f32 %v1232, %v1243
  %v1247 = vld [vmem:[%s14] sm:$0xf]
  %v1248 = vld [vmem:[%s14 + $0x4] sm:$0xf]
  %s1249 = scalar_lea.vmem %s14, 8
  %v1250 = vld [vmem:[%s1249] sm:$0xf]
  %v1251 = vld [vmem:[%s1249 + $0x4] sm:$0xf]
  %v1254 = vunpack.c.l.b16 %v1250
  %v1255 = vunpack.c.l.b16 %v1251
  %v1256 = vpack.c.b16 %v1255, %v1254
  %v1258 = vsel %vm81, %v1256, 0
  %1260 = vmatprep.subr.bf16.mxu0 0
  %1261 = vmatpush1.bf16.msra.mxu0 %v716
  %1262 = vmatprep.subr.bf16.mxu0 0
  %1263 = vmatpush1.bf16.msra.mxu0 0
  %1264 = vmatprep.subr.bf16.mxu0 0
  %1265 = vmatpush1.bf16.msra.mxu0 0
  %1266 = vmatprep.subr.bf16.mxu0 0
  %1267 = vmatpush1.bf16.msra.mxu0 0
  %1268 = vmatprep.subr.bf16.mxu0 0
  %1269 = vmatpush1.bf16.msra.mxu0 0
  %1270 = vmatprep.subr.bf16.mxu0 0
  %1271 = vmatpush1.bf16.msra.mxu0 0
  %1272 = vmatprep.subr.bf16.mxu0 0
  %1273 = vmatpush1.bf16.msra.mxu0 0
  %1274 = vmatprep.subr.bf16.mxu0 0
  %1275 = vmatpush1.bf16.msra.mxu0 0
  %1276 = vmatprep.subr.bf16.mxu0 0
  %1277 = vmatpush1.bf16.msra.mxu0 0
  %1278 = vmatprep.subr.bf16.mxu0 0
  %1279 = vmatpush1.bf16.msra.mxu0 0
  %1280 = vmatprep.subr.bf16.mxu0 0
  %1281 = vmatpush1.bf16.msra.mxu0 0
  %1282 = vmatprep.subr.bf16.mxu0 0
  %1283 = vmatpush1.bf16.msra.mxu0 0
  %1284 = vmatprep.subr.bf16.mxu0 0
  %1285 = vmatpush1.bf16.msra.mxu0 0
  %1286 = vmatprep.subr.bf16.mxu0 0
  %1287 = vmatpush1.bf16.msra.mxu0 0
  %1288 = vmatprep.subr.bf16.mxu0 0
  %1289 = vmatpush1.bf16.msra.mxu0 0
  %1290 = vmatprep.subr.bf16.mxu0 0
  %1291 = vmatpush1.bf16.msra.mxu0 0
  %1292 = vmatprep.mubr.bf16.mxu0 0
  %1293 = vmatmul.mubr.bf16.gmra.mrb[0].mxu0 %v1258
  %v1294 = vpop.f32.mrb[0].mxu0
  %v1295 = vadd.f32 0.0, %v1294
  %v1296 = vpop.f32.mrb[0].mxu0
  %v1297 = vpop.f32.mrb[0].mxu0
  %v1298 = vadd.f32 0.0, %v1297
  %v1299 = vpop.f32.mrb[0].mxu0
  %1300 = vdwg.mxu0
  %v1303 = vunpack.c.l.b16 %v1247
  %v1304 = vunpack.c.l.b16 %v1248
  %v1305 = vpack.c.b16 %v1304, %v1303
  %v1307 = vsel %vm81, %v1305, 0
  %1309 = vmatprep.subr.bf16.mxu0 0
  %1310 = vmatpush1.bf16.msra.mxu0 %v768
  %1311 = vmatprep.subr.bf16.mxu0 0
  %1312 = vmatpush1.bf16.msra.mxu0 0
  %1313 = vmatprep.subr.bf16.mxu0 0
  %1314 = vmatpush1.bf16.msra.mxu0 0
  %1315 = vmatprep.subr.bf16.mxu0 0
  %1316 = vmatpush1.bf16.msra.mxu0 0
  %1317 = vmatprep.subr.bf16.mxu0 0
  %1318 = vmatpush1.bf16.msra.mxu0 0
  %1319 = vmatprep.subr.bf16.mxu0 0
  %1320 = vmatpush1.bf16.msra.mxu0 0
  %1321 = vmatprep.subr.bf16.mxu0 0
  %1322 = vmatpush1.bf16.msra.mxu0 0
  %1323 = vmatprep.subr.bf16.mxu0 0
  %1324 = vmatpush1.bf16.msra.mxu0 0
  %1325 = vmatprep.subr.bf16.mxu0 0
  %1326 = vmatpush1.bf16.msra.mxu0 0
  %1327 = vmatprep.subr.bf16.mxu0 0
  %1328 = vmatpush1.bf16.msra.mxu0 0
  %1329 = vmatprep.subr.bf16.mxu0 0
  %1330 = vmatpush1.bf16.msra.mxu0 0
  %1331 = vmatprep.subr.bf16.mxu0 0
  %1332 = vmatpush1.bf16.msra.mxu0 0
  %1333 = vmatprep.subr.bf16.mxu0 0
  %1334 = vmatpush1.bf16.msra.mxu0 0
  %1335 = vmatprep.subr.bf16.mxu0 0
  %1336 = vmatpush1.bf16.msra.mxu0 0
  %1337 = vmatprep.subr.bf16.mxu0 0
  %1338 = vmatpush1.bf16.msra.mxu0 0
  %1339 = vmatprep.subr.bf16.mxu0 0
  %1340 = vmatpush1.bf16.msra.mxu0 0
  %1341 = vmatprep.mubr.bf16.mxu0 0
  %1342 = vmatmul.mubr.bf16.gmra.mrb[0].mxu0 %v1307
  %v1343 = vpop.f32.mrb[0].mxu0
  %v1344 = vadd.f32 %v1295, %v1343
  %v1345 = vpop.f32.mrb[0].mxu0
  %v1346 = vpop.f32.mrb[0].mxu0
  %v1347 = vadd.f32 %v1298, %v1346
  %v1348 = vpop.f32.mrb[0].mxu0
  %1349 = vdwg.mxu0
  %s1350 = scalar_lea.vmem %s14, 16
  %v1351 = vld [vmem:[%s1350] sm:$0xf]
  %v1352 = vld [vmem:[%s1350 + $0x4] sm:$0xf]
  %v1355 = vunpack.c.l.b16 %v1351
  %v1356 = vunpack.c.l.b16 %v1352
  %v1357 = vpack.c.b16 %v1356, %v1355
  %v1359 = vsel %vm81, %v1357, 0
  %1361 = vmatprep.subr.bf16.mxu0 0
  %1362 = vmatpush1.bf16.msra.mxu0 %v823
  %1363 = vmatprep.subr.bf16.mxu0 0
  %1364 = vmatpush1.bf16.msra.mxu0 0
  %1365 = vmatprep.subr.bf16.mxu0 0
  %1366 = vmatpush1.bf16.msra.mxu0 0
  %1367 = vmatprep.subr.bf16.mxu0 0
  %1368 = vmatpush1.bf16.msra.mxu0 0
  %1369 = vmatprep.subr.bf16.mxu0 0
  %1370 = vmatpush1.bf16.msra.mxu0 0
  %1371 = vmatprep.subr.bf16.mxu0 0
  %1372 = vmatpush1.bf16.msra.mxu0 0
  %1373 = vmatprep.subr.bf16.mxu0 0
  %1374 = vmatpush1.bf16.msra.mxu0 0
  %1375 = vmatprep.subr.bf16.mxu0 0
  %1376 = vmatpush1.bf16.msra.mxu0 0
  %1377 = vmatprep.subr.bf16.mxu0 0
  %1378 = vmatpush1.bf16.msra.mxu0 0
  %1379 = vmatprep.subr.bf16.mxu0 0
  %1380 = vmatpush1.bf16.msra.mxu0 0
  %1381 = vmatprep.subr.bf16.mxu0 0
  %1382 = vmatpush1.bf16.msra.mxu0 0
  %1383 = vmatprep.subr.bf16.mxu0 0
  %1384 = vmatpush1.bf16.msra.mxu0 0
  %1385 = vmatprep.subr.bf16.mxu0 0
  %1386 = vmatpush1.bf16.msra.mxu0 0
  %1387 = vmatprep.subr.bf16.mxu0 0
  %1388 = vmatpush1.bf16.msra.mxu0 0
  %1389 = vmatprep.subr.bf16.mxu0 0
  %1390 = vmatpush1.bf16.msra.mxu0 0
  %1391 = vmatprep.subr.bf16.mxu0 0
  %1392 = vmatpush1.bf16.msra.mxu0 0
  %1393 = vmatprep.mubr.bf16.mxu0 0
  %1394 = vmatmul.mubr.bf16.gmra.mrb[0].mxu0 %v1359
  %v1395 = vpop.f32.mrb[0].mxu0
  %v1396 = vadd.f32 0.0, %v1395
  %v1397 = vpop.f32.mrb[0].mxu0
  %v1398 = vpop.f32.mrb[0].mxu0
  %v1399 = vadd.f32 0.0, %v1398
  %v1400 = vpop.f32.mrb[0].mxu0
  %1401 = vdwg.mxu0
  %v1402 = vadd.f32 %v1344, %v1396
  %v1403 = vadd.f32 %v1347, %v1399
  %v1404 = vadd.f32 %v1245, %v1402
  %v1405 = vadd.f32 %v1246, %v1403
  %vm1406 = vcmp.ge.f32.partialorder %v1404, 0.0
  %vm1407 = vcmp.ge.f32.partialorder %v1405, 0.0
  %v1408 = vmul.f32 %v1404, 0.2
  %v1409 = vmul.f32 %v1405, 0.2
  %v1410 = vsel %vm1406, %v1404, %v1408
  %v1411 = vsel %vm1407, %v1405, %v1409
  %1412 = vst [vmem:[%s16] sm:$0xff] %v1410
  %1413 = vst [vmem:[%s16 + $0x8] sm:$0xff] %v1411
  // Predicated region
  $region66: #{_lambda_.1} parent=0 // pred_check
    _
  $region67: #{_lambda_.1} parent=0 // pred_check_branch
    %1415 = sbr.rel (0) target = $region69
  $region68: #{_lambda_.1} parent=0 // pred_region
    _
  $region69: #{_lambda_.1} parent=0 // pred_fallthru
    _
  // Predicated region
  $region70: #{_lambda_.1} parent=0 // pred_check
    _
  $region71: #{_lambda_.1} parent=0 // pred_check_branch
    %1417 = sbr.rel (0) target = $region73
  $region72: #{_lambda_.1} parent=0 // pred_region
    _
  $region73: #{_lambda_.1} parent=0 // pred_fallthru
    _

</llo_original>
